<compile_context>
chip_gen: v7x
topology: tpu7x:2x2x1
jax: 0.10.0
libtpu: 0.0.40
codegen_flags: <defaults>
</compile_context>

<pallas_src>
import functools

import numpy as np
import jax
import jax.numpy as jnp
from jax import lax
from jax.experimental import pallas as pl
from jax.experimental.pallas import tpu as pltpu


def _neural_solver_kernel(steps_ref, tf_ref, x_ref, g_ref, w1_ref, b1_ref,
                          w2_ref, b2_ref, o_ref, *, stepsize, n_nbr, n_patch,
                          batch_block, mxu_dtype):
    """One batch block (M = batch_block * n_patch rows) per grid step.

    steps_ref : (n_blocks,) i32 SMEM  -- per-block Euler step count (scalar prefetch)
    tf_ref    : (M, 1)      f32 VMEM  -- t_final replicated per dual-mesh row
    x_ref     : (M, D)      f32 VMEM  -- initial state
    g_ref     : (K, P, P)   mxu VMEM  -- per-batch-element one-hot gather matrices
    w1_ref    : (D, K*H)    mxu VMEM  -- fused, lane-dense first-layer weights
    b1_ref    : (1, H)      f32 VMEM
    w2_ref    : (H, D)      mxu VMEM  -- second layer, zero-padded to D columns
    b2_ref    : (1, D)      f32 VMEM  -- second-layer bias, zero-padded to D
    o_ref     : (M, D)      f32 VMEM  -- final state (written exactly once)
    """
    P = n_patch
    bb = batch_block
    K = n_nbr
    H = b1_ref.shape[1]
    D = x_ref.shape[1]
    M = bb * P
    step_f = float(stepsize)

    # dynamic per-block trip count (scalar prefetch): skips exact-zero-dt tail steps
    n_steps_blk = steps_ref[pl.program_id(0)]

    # loop-invariant loads / broadcasts hoisted out of the Euler loop (live in vregs)
    x0 = x_ref[...]                                   # (M, D) f32 Euler state
    tf = tf_ref[...]                                  # (M, 1)
    w1c = w1_ref[...]                                 # (D, K*H) mxu dtype
    w2 = w2_ref[...]                                  # (H, D)   mxu dtype
    gk = [g_ref[k] for k in range(K)]                 # K x (P, P) mxu dtype
    b1m = jnp.broadcast_to(b1_ref[...], (P, H))       # hoisted: no per-step broadcast
    b2m = jnp.broadcast_to(b2_ref[...], (M, D))       # hoisted

    def euler_step(s, x):
        t = s.astype(jnp.float32) * step_f
        # fused lane-dense first layer over the collapsed batch block: (M, K*H)
        y = jnp.dot(x.astype(mxu_dtype), w1c, preferred_element_type=jnp.float32)
        # de-kron'ed one-hot neighbour gather, applied per batch element (no zero blocks)
        accs = []
        for b in range(bb):
            yb = y[b * P:(b + 1) * P, :]
            acc = b1m
            for k in range(K):
                acc = acc + jnp.dot(
                    gk[k], yb[:, k * H:(k + 1) * H].astype(mxu_dtype),
                    preferred_element_type=jnp.float32)
            accs.append(acc)
        h = jnp.tanh(accs[0] if bb == 1 else jnp.concatenate(accs, axis=0))   # (M, H)
        dx = jnp.dot(h.astype(mxu_dtype), w2,
                     preferred_element_type=jnp.float32) + b2m                # (M, D)
        # masked forward-Euler step: dt = clip(t_final - t, 0, stepsize)
        dt = jnp.minimum(jnp.maximum(tf - t, 0.0), step_f)                    # (M, 1)
        return x + dt * dx

    x_fin = lax.fori_loop(0, n_steps_blk, euler_step, x0)
    o_ref[...] = x_fin.astype(o_ref.dtype)


def neural_solver_forward(x, t_final, nbr, w1, b1, w2, b2, *, d_lat, stepsize,
                          batch_block=None, mxu_dtype=jnp.bfloat16):
    """JAX wrapper: builds gather matrices / fused weights and calls the Pallas kernel.

    `mxu_dtype` is the MXU operand dtype (bf16 default; float32 for bit-strict checks).
    The integration length is handled per batch block via scalar prefetch, so the
    wrapper is jax.jit-able even with traced t_final.
    """
    B, P, D = x.shape
    K = nbr.shape[1]              # 4 = self + 3 neighbours
    H = w1.shape[1]
    assert w1.shape[0] == K * D

    f32 = jnp.float32
    t_final = jnp.asarray(t_final, f32)
    if t_final.ndim == 0:
        t_final = jnp.broadcast_to(t_final, (B,))

    mxu_bytes = jnp.dtype(mxu_dtype).itemsize

    def est_vmem(bbx):
        # conservative working-set estimate (double-buffered blocks + constants + intermediates)
        Mx = bbx * P
        blocks = 4 * Mx * (1 + 2 * D)                                   # tf / x / o (f32)
        consts = mxu_bytes * (K * P * P + D * K * H + H * D) + 4 * (H + D)
        inter = 4 * Mx * (K * H + H + 2 * D)                            # Y, h, dx, ...
        return 2 * blocks + 2 * consts + 2 * inter

    if batch_block is None:
        # keep the grid >= 2 (both v7x TensorCores busy) and the block within a VMEM budget
        budget = 24 << 20
        cands = sorted({d for d in range(1, max(1, B // 2) + 1) if B % d == 0} | {1},
                       reverse=True)
        bb = 1
        for d in cands:
            if est_vmem(d) <= budget:
                bb = d
                break
        if (bb * P) % 8 != 0:      # keep the (8,128) sublane constraint satisfied
            bb = B
    else:
        bb = int(batch_block)
    assert B % bb == 0, "batch_block must divide the batch size"
    num_blocks = B // bb
    M = bb * P

    # second layer padded to D columns (== pad(fz, (0, D - d_lat)) folded into the weights)
    w2p = jnp.zeros((H, D), f32).at[:, :d_lat].set(w2.astype(f32)).astype(mxu_dtype)
    b2p = jnp.zeros((1, D), f32).at[0, :d_lat].set(b2.astype(f32))
    # fused, lane-dense first-layer weights: (D, K*H); K*H = 128 lanes
    w1c = jnp.transpose(w1.astype(f32).reshape(K, D, H),
                        (1, 0, 2)).reshape(D, K * H).astype(mxu_dtype)
    b1r = b1.astype(f32).reshape(1, H)
    # per-batch-element one-hot gather matrices: G[k, i, nbr[i, k]] = 1 (exact in bf16)
    G = jnp.zeros((K, P, P), mxu_dtype)
    G = G.at[jnp.arange(K)[:, None], jnp.arange(P)[None, :], nbr.T].set(1.0)

    xf = x.reshape(B * P, D).astype(f32)
    tf_col = jnp.repeat(t_final, P).reshape(B * P, 1)
    # per-block step count: ceil(max t_final in block / dt); skipped steps have dt == 0
    steps_blk = jnp.maximum(
        jnp.ceil(t_final.reshape(num_blocks, bb).max(axis=1) / float(stepsize)),
        0.0).astype(jnp.int32)

    kernel = functools.partial(_neural_solver_kernel, stepsize=float(stepsize),
                               n_nbr=int(K), n_patch=int(P), batch_block=int(bb),
                               mxu_dtype=mxu_dtype)

    vmem_limit = int(min(100 << 20, max(32 << 20, est_vmem(bb) + (8 << 20))))

    def call(single_buffer_consts):
        # grid-constant inputs only need a single VMEM buffer
        cmode = {"pipeline_mode": pl.Buffered(1)} if single_buffer_consts else {}
        grid_spec = pltpu.PrefetchScalarGridSpec(
            num_scalar_prefetch=1,
            grid=(num_blocks,),
            in_specs=[
                pl.BlockSpec((M, 1), lambda i, s: (i, 0)),             # t_final column
                pl.BlockSpec((M, D), lambda i, s: (i, 0)),             # x (collapsed batch)
                pl.BlockSpec((K, P, P), lambda i, s: (0, 0, 0), **cmode),  # gather matrices
                pl.BlockSpec((D, K * H), lambda i, s: (0, 0), **cmode),    # fused W1
                pl.BlockSpec((1, H), lambda i, s: (0, 0), **cmode),        # b1
                pl.BlockSpec((H, D), lambda i, s: (0, 0), **cmode),        # W2 (padded)
                pl.BlockSpec((1, D), lambda i, s: (0, 0), **cmode),        # b2 (padded)
            ],
            out_specs=pl.BlockSpec((M, D), lambda i, s: (i, 0)),
        )
        return pl.pallas_call(
            kernel,
            out_shape=jax.ShapeDtypeStruct((B * P, D), f32),
            grid_spec=grid_spec,
            compiler_params=pltpu.CompilerParams(
                dimension_semantics=("parallel",),
                vmem_limit_bytes=vmem_limit),
        )(steps_blk, tf_col, xf, G, w1c, b1r, w2p, b2p)

    try:
        out = call(True)
    except Exception:
        # fallback for jax versions where pipeline_mode=pl.Buffered(1) is not supported
        # in pallas_call; identical semantics, constants just get default double-buffering.
        out = call(False)

    return out.reshape(B, P, D).astype(x.dtype)


def neural_solver_reference(x, t_final, nbr, w1, b1, w2, b2, *, d_lat, stepsize,
                            n_steps):
    """Pure-JAX reference matching the PyTorch forward semantics."""
    for s in range(n_steps):
        t = s * stepsize
        masked = jnp.clip(t_final - t, 0.0, stepsize)[:, None, None]   # (B,1,1)
        z = x[:, nbr, :]                                               # (B,P,K,D)
        zf = z.reshape(x.shape[0], x.shape[1], -1)                     # (B,P,K*D)
        h = jnp.tanh(zf @ w1 + b1)
        f = h @ w2 + b2                                                # (B,P,d_lat)
        dx = jnp.pad(f, ((0, 0), (0, 0), (0, x.shape[-1] - d_lat)))
        x = x + masked * dx
    return x


if __name__ == "__main__":
    # small synthetic problem consistent with the module's forward
    B = 2          # batch
    P = 16         # n_patch (vertices of the dual mesh)
    d_lat = 4      # d_latent
    d_anc = 2      # d_ancillary
    D = d_lat + d_anc
    K = 4          # self + 3 neighbours (matches the 4-slot gather in torch)
    H = 32         # hidden width of the interaction MLP
    stepsize = 1.0

    key = jax.random.PRNGKey(0)
    kx, kw1, kb1, kw2, kb2 = jax.random.split(key, 5)

    x = jax.random.normal(kx, (B, P, D), dtype=jnp.float32)
    t_final = jnp.array([3.0, 1.5], dtype=jnp.float32)

    # synthetic spherical-patch-covering neighbour list: [self, i-1, i+1, i+P/2]
    nbr_np = np.stack(
        [np.arange(P),
         (np.arange(P) - 1) % P,
         (np.arange(P) + 1) % P,
         (np.arange(P) + P // 2) % P], axis=1).astype(np.int32)
    nbr = jnp.asarray(nbr_np)

    # deterministic interaction-model parameters (Phi_theta)
    w1 = jax.random.normal(kw1, (K * D, H), dtype=jnp.float32) * 0.1
    b1 = jax.random.normal(kb1, (H,), dtype=jnp.float32) * 0.1
    w2 = jax.random.normal(kw2, (H, d_lat), dtype=jnp.float32) * 0.1
    b2 = jax.random.normal(kb2, (d_lat,), dtype=jnp.float32) * 0.1

    n_steps = int(np.ceil(float(jnp.max(t_final)) / stepsize))
    ref = neural_solver_reference(x, t_final, nbr, w1, b1, w2, b2,
                                  d_lat=d_lat, stepsize=stepsize, n_steps=n_steps)
    ref = np.asarray(jax.block_until_ready(ref))

    # 1) bit-strict path (f32 MXU operands), default batch_block (grid = 2 blocks)
    out_f32 = jax.block_until_ready(
        neural_solver_forward(x, t_final, nbr, w1, b1, w2, b2,
                              d_lat=d_lat, stepsize=stepsize,
                              mxu_dtype=jnp.float32))
    assert out_f32.shape == (B, P, D)
    np.testing.assert_allclose(np.asarray(out_f32), ref, rtol=1e-5, atol=1e-5)

    # 2) de-kron'ed multi-batch block path (batch_block=2, grid=1), still f32-exact
    out_f32_bb2 = jax.block_until_ready(
        neural_solver_forward(x, t_final, nbr, w1, b1, w2, b2,
                              d_lat=d_lat, stepsize=stepsize,
                              mxu_dtype=jnp.float32, batch_block=2))
    np.testing.assert_allclose(np.asarray(out_f32_bb2), ref, rtol=1e-5, atol=1e-5)

    # 3) default fast path: bf16 MXU operands, f32 accumulation / Euler state
    out_bf16 = jax.block_until_ready(
        neural_solver_forward(x, t_final, nbr, w1, b1, w2, b2,
                              d_lat=d_lat, stepsize=stepsize))
    np.testing.assert_allclose(np.asarray(out_bf16), ref, rtol=5e-2, atol=5e-2)

    print("KERNEL_OK")
</pallas_src>

<mosaic_0001>
module attributes {stable_mosaic.version = 11 : i64} {
  func.func @_neural_solver_kernel(%arg0: i32, %arg1: memref<2xi32, #tpu.memory_space<smem>>, %arg2: memref<16x1xf32, #tpu.memory_space<vmem>>, %arg3: memref<16x6xf32, #tpu.memory_space<vmem>>, %arg4: memref<4x16x16xf32, #tpu.memory_space<vmem>>, %arg5: memref<6x128xf32, #tpu.memory_space<vmem>>, %arg6: memref<1x32xf32, #tpu.memory_space<vmem>>, %arg7: memref<32x6xf32, #tpu.memory_space<vmem>>, %arg8: memref<1x6xf32, #tpu.memory_space<vmem>>, %arg9: memref<16x6xf32, #tpu.memory_space<vmem>>) attributes {dimension_semantics = [#tpu.dimension_semantics<parallel>], iteration_bounds = array<i64: 2>, scalar_prefetch = 1 : i64, scratch_operands = 0 : i64, tpu.core_type = #tpu.core_type<tc>, window_params = [{transform_indices = @transform_0, window_bounds = array<i64: 16, 1>}, {transform_indices = @transform_1, window_bounds = array<i64: 16, 6>}, {pipeline_mode = #tpu.pipeline_mode<synchronous>, transform_indices = @transform_2, window_bounds = array<i64: 4, 16, 16>}, {pipeline_mode = #tpu.pipeline_mode<synchronous>, transform_indices = @transform_3, window_bounds = array<i64: 6, 128>}, {pipeline_mode = #tpu.pipeline_mode<synchronous>, transform_indices = @transform_4, window_bounds = array<i64: 1, 32>}, {pipeline_mode = #tpu.pipeline_mode<synchronous>, transform_indices = @transform_5, window_bounds = array<i64: 32, 6>}, {pipeline_mode = #tpu.pipeline_mode<synchronous>, transform_indices = @transform_6, window_bounds = array<i64: 1, 6>}, {transform_indices = @transform_7, window_bounds = array<i64: 16, 6>}]} {
    %0 = arith.index_cast %arg0 : i32 to index
    %1 = memref.load %arg1[%0] : memref<2xi32, #tpu.memory_space<smem>>
    %c0 = arith.constant 0 : index
    %c0_0 = arith.constant 0 : index
    %2 = vector.load %arg3[%c0, %c0_0] : memref<16x6xf32, #tpu.memory_space<vmem>>, vector<16x6xf32>
    %c0_1 = arith.constant 0 : index
    %c0_2 = arith.constant 0 : index
    %3 = vector.load %arg2[%c0_1, %c0_2] : memref<16x1xf32, #tpu.memory_space<vmem>>, vector<16x1xf32>
    %c0_3 = arith.constant 0 : index
    %c0_4 = arith.constant 0 : index
    %4 = vector.load %arg5[%c0_3, %c0_4] : memref<6x128xf32, #tpu.memory_space<vmem>>, vector<6x128xf32>
    %c0_5 = arith.constant 0 : index
    %c0_6 = arith.constant 0 : index
    %5 = vector.load %arg7[%c0_5, %c0_6] : memref<32x6xf32, #tpu.memory_space<vmem>>, vector<32x6xf32>
    %c0_7 = arith.constant 0 : index
    %c0_8 = arith.constant 0 : index
    %c0_9 = arith.constant 0 : index
    %6 = vector.load %arg4[%c0_7, %c0_8, %c0_9] : memref<4x16x16xf32, #tpu.memory_space<vmem>>, vector<1x16x16xf32>
    %7 = vector.shape_cast %6 : vector<1x16x16xf32> to vector<16x16xf32>
    %c1 = arith.constant 1 : index
    %c0_10 = arith.constant 0 : index
    %c0_11 = arith.constant 0 : index
    %8 = vector.load %arg4[%c1, %c0_10, %c0_11] : memref<4x16x16xf32, #tpu.memory_space<vmem>>, vector<1x16x16xf32>
    %9 = vector.shape_cast %8 : vector<1x16x16xf32> to vector<16x16xf32>
    %c2 = arith.constant 2 : index
    %c0_12 = arith.constant 0 : index
    %c0_13 = arith.constant 0 : index
    %10 = vector.load %arg4[%c2, %c0_12, %c0_13] : memref<4x16x16xf32, #tpu.memory_space<vmem>>, vector<1x16x16xf32>
    %11 = vector.shape_cast %10 : vector<1x16x16xf32> to vector<16x16xf32>
    %c3 = arith.constant 3 : index
    %c0_14 = arith.constant 0 : index
    %c0_15 = arith.constant 0 : index
    %12 = vector.load %arg4[%c3, %c0_14, %c0_15] : memref<4x16x16xf32, #tpu.memory_space<vmem>>, vector<1x16x16xf32>
    %13 = vector.shape_cast %12 : vector<1x16x16xf32> to vector<16x16xf32>
    %c0_16 = arith.constant 0 : index
    %c0_17 = arith.constant 0 : index
    %14 = vector.load %arg6[%c0_16, %c0_17] : memref<1x32xf32, #tpu.memory_space<vmem>>, vector<1x32xf32>
    %15 = vector.shape_cast %14 : vector<1x32xf32> to vector<1x32xf32>
    %16 = vector.broadcast %15 : vector<1x32xf32> to vector<16x32xf32>
    %c0_18 = arith.constant 0 : index
    %c0_19 = arith.constant 0 : index
    %17 = vector.load %arg8[%c0_18, %c0_19] : memref<1x6xf32, #tpu.memory_space<vmem>>, vector<1x6xf32>
    %18 = vector.shape_cast %17 : vector<1x6xf32> to vector<1x6xf32>
    %19 = vector.broadcast %18 : vector<1x6xf32> to vector<16x6xf32>
    %c0_i32 = arith.constant 0 : i32
    %20 = arith.subi %1, %c0_i32 : i32
    %21 = arith.addi %c0_i32, %20 : i32
    %c1_i32 = arith.constant 1 : i32
    %22 = scf.for %arg10 = %c0_i32 to %21 step %c1_i32 iter_args(%arg11 = %2) -> (vector<16x6xf32>)  : i32 {
      %24 = arith.sitofp %arg10 : i32 to f32
      %cst = arith.constant 1.000000e+00 : f32
      %25 = arith.mulf %24, %cst : f32
      %cst_22 = arith.constant dense<0.000000e+00> : vector<16x128xf32>
      %26 = tpu.matmul %arg11, %4, %cst_22 {dimension_numbers = #tpu.dot_dimension_numbers<[1], [0], [0], [1], [0, 0, 1, 1], [], []>} : vector<16x6xf32>, vector<6x128xf32>, vector<16x128xf32> -> vector<16x128xf32>
      %27 = vector.extract_strided_slice %26 {offsets = [0, 0], sizes = [16, 32], strides = [1, 1]} : vector<16x128xf32> to vector<16x32xf32>
      %cst_23 = arith.constant dense<0.000000e+00> : vector<16x32xf32>
      %28 = tpu.matmul %7, %27, %cst_23 {dimension_numbers = #tpu.dot_dimension_numbers<[1], [0], [0], [1], [0, 0, 1, 1], [], []>} : vector<16x16xf32>, vector<16x32xf32>, vector<16x32xf32> -> vector<16x32xf32>
      %29 = arith.addf %16, %28 : vector<16x32xf32>
      %30 = vector.extract_strided_slice %26 {offsets = [0, 32], sizes = [16, 32], strides = [1, 1]} : vector<16x128xf32> to vector<16x32xf32>
      %cst_24 = arith.constant dense<0.000000e+00> : vector<16x32xf32>
      %31 = tpu.matmul %9, %30, %cst_24 {dimension_numbers = #tpu.dot_dimension_numbers<[1], [0], [0], [1], [0, 0, 1, 1], [], []>} : vector<16x16xf32>, vector<16x32xf32>, vector<16x32xf32> -> vector<16x32xf32>
      %32 = arith.addf %29, %31 : vector<16x32xf32>
      %33 = vector.extract_strided_slice %26 {offsets = [0, 64], sizes = [16, 32], strides = [1, 1]} : vector<16x128xf32> to vector<16x32xf32>
      %cst_25 = arith.constant dense<0.000000e+00> : vector<16x32xf32>
      %34 = tpu.matmul %11, %33, %cst_25 {dimension_numbers = #tpu.dot_dimension_numbers<[1], [0], [0], [1], [0, 0, 1, 1], [], []>} : vector<16x16xf32>, vector<16x32xf32>, vector<16x32xf32> -> vector<16x32xf32>
      %35 = arith.addf %32, %34 : vector<16x32xf32>
      %36 = vector.extract_strided_slice %26 {offsets = [0, 96], sizes = [16, 32], strides = [1, 1]} : vector<16x128xf32> to vector<16x32xf32>
      %cst_26 = arith.constant dense<0.000000e+00> : vector<16x32xf32>
      %37 = tpu.matmul %13, %36, %cst_26 {dimension_numbers = #tpu.dot_dimension_numbers<[1], [0], [0], [1], [0, 0, 1, 1], [], []>} : vector<16x16xf32>, vector<16x32xf32>, vector<16x32xf32> -> vector<16x32xf32>
      %38 = arith.addf %35, %37 : vector<16x32xf32>
      %39 = math.tanh %38 : vector<16x32xf32>
      %cst_27 = arith.constant dense<0.000000e+00> : vector<16x6xf32>
      %40 = tpu.matmul %39, %5, %cst_27 {dimension_numbers = #tpu.dot_dimension_numbers<[1], [0], [0], [1], [0, 0, 1, 1], [], []>} : vector<16x32xf32>, vector<32x6xf32>, vector<16x6xf32> -> vector<16x6xf32>
      %41 = arith.addf %40, %19 : vector<16x6xf32>
      %42 = vector.broadcast %25 : f32 to vector<16x1xf32>
      %43 = arith.subf %3, %42 : vector<16x1xf32>
      %cst_28 = arith.constant 0.000000e+00 : f32
      %44 = vector.broadcast %cst_28 : f32 to vector<16x1xf32>
      %45 = arith.maximumf %43, %44 : vector<16x1xf32>
      %cst_29 = arith.constant 1.000000e+00 : f32
      %46 = vector.broadcast %cst_29 : f32 to vector<16x1xf32>
      %47 = arith.minimumf %45, %46 : vector<16x1xf32>
      %48 = vector.broadcast %47 : vector<16x1xf32> to vector<16x6xf32>
      %49 = arith.mulf %48, %41 : vector<16x6xf32>
      %50 = arith.addf %arg11, %49 : vector<16x6xf32>
      scf.yield %50 : vector<16x6xf32>
    }
    %c0_20 = arith.constant 0 : index
    %c0_21 = arith.constant 0 : index
    %23 = vector.load %arg9[%c0_20, %c0_21] : memref<16x6xf32, #tpu.memory_space<vmem>>, vector<16x6xf32>
    tpu.vector_store %arg9[%c0_20, %c0_21], %22 {strides = array<i32>} : memref<16x6xf32, #tpu.memory_space<vmem>>, vector<16x6xf32>,
    return
  }
  func.func @transform_0(%arg0: i32, %arg1: memref<2xi32, #tpu.memory_space<smem>>) -> (i32, i32) {
    %c0_i32 = arith.constant 0 : i32
    %c0_i32_0 = arith.constant 0 : i32
    return %arg0, %c0_i32 : i32, i32
  }
  func.func @transform_1(%arg0: i32, %arg1: memref<2xi32, #tpu.memory_space<smem>>) -> (i32, i32) {
    %c0_i32 = arith.constant 0 : i32
    %c0_i32_0 = arith.constant 0 : i32
    return %arg0, %c0_i32 : i32, i32
  }
  func.func @transform_2(%arg0: i32, %arg1: memref<2xi32, #tpu.memory_space<smem>>) -> (i32, i32, i32) {
    %c0_i32 = arith.constant 0 : i32
    %c0_i32_0 = arith.constant 0 : i32
    %c0_i32_1 = arith.constant 0 : i32
    %c0_i32_2 = arith.constant 0 : i32
    return %c0_i32, %c0_i32_0, %c0_i32_1 : i32, i32, i32
  }
  func.func @transform_3(%arg0: i32, %arg1: memref<2xi32, #tpu.memory_space<smem>>) -> (i32, i32) {
    %c0_i32 = arith.constant 0 : i32
    %c0_i32_0 = arith.constant 0 : i32
    %c0_i32_1 = arith.constant 0 : i32
    return %c0_i32, %c0_i32_0 : i32, i32
  }
  func.func @transform_4(%arg0: i32, %arg1: memref<2xi32, #tpu.memory_space<smem>>) -> (i32, i32) {
    %c0_i32 = arith.constant 0 : i32
    %c0_i32_0 = arith.constant 0 : i32
    %c0_i32_1 = arith.constant 0 : i32
    return %c0_i32, %c0_i32_0 : i32, i32
  }
  func.func @transform_5(%arg0: i32, %arg1: memref<2xi32, #tpu.memory_space<smem>>) -> (i32, i32) {
    %c0_i32 = arith.constant 0 : i32
    %c0_i32_0 = arith.constant 0 : i32
    %c0_i32_1 = arith.constant 0 : i32
    return %c0_i32, %c0_i32_0 : i32, i32
  }
  func.func @transform_6(%arg0: i32, %arg1: memref<2xi32, #tpu.memory_space<smem>>) -> (i32, i32) {
    %c0_i32 = arith.constant 0 : i32
    %c0_i32_0 = arith.constant 0 : i32
    %c0_i32_1 = arith.constant 0 : i32
    return %c0_i32, %c0_i32_0 : i32, i32
  }
  func.func @transform_7(%arg0: i32, %arg1: memref<2xi32, #tpu.memory_space<smem>>) -> (i32, i32) {
    %c0_i32 = arith.constant 0 : i32
    %c0_i32_0 = arith.constant 0 : i32
    return %arg0, %c0_i32 : i32, i32
  }
}

module attributes {stable_mosaic.version = 11 : i64} {
  func.func @_neural_solver_kernel(%arg0: i32, %arg1: memref<2xi32, #tpu.memory_space<smem>>, %arg2: memref<16x1xf32, #tpu.memory_space<vmem>>, %arg3: memref<16x6xf32, #tpu.memory_space<vmem>>, %arg4: memref<4x16x16xf32, #tpu.memory_space<vmem>>, %arg5: memref<6x128xf32, #tpu.memory_space<vmem>>, %arg6: memref<1x32xf32, #tpu.memory_space<vmem>>, %arg7: memref<32x6xf32, #tpu.memory_space<vmem>>, %arg8: memref<1x6xf32, #tpu.memory_space<vmem>>, %arg9: memref<16x6xf32, #tpu.memory_space<vmem>>) attributes {dimension_semantics = [#tpu.dimension_semantics<parallel>], iteration_bounds = array<i64: 2>, scalar_prefetch = 1 : i64, scratch_operands = 0 : i64, tpu.core_type = #tpu.core_type<tc>, window_params = [{transform_indices = @transform_0, window_bounds = array<i64: 16, 1>}, {transform_indices = @transform_1, window_bounds = array<i64: 16, 6>}, {pipeline_mode = #tpu.pipeline_mode<synchronous>, transform_indices = @transform_2, window_bounds = array<i64: 4, 16, 16>}, {pipeline_mode = #tpu.pipeline_mode<synchronous>, transform_indices = @transform_3, window_bounds = array<i64: 6, 128>}, {pipeline_mode = #tpu.pipeline_mode<synchronous>, transform_indices = @transform_4, window_bounds = array<i64: 1, 32>}, {pipeline_mode = #tpu.pipeline_mode<synchronous>, transform_indices = @transform_5, window_bounds = array<i64: 32, 6>}, {pipeline_mode = #tpu.pipeline_mode<synchronous>, transform_indices = @transform_6, window_bounds = array<i64: 1, 6>}, {transform_indices = @transform_7, window_bounds = array<i64: 16, 6>}]} {
    %0 = arith.index_cast %arg0 : i32 to index
    %1 = memref.load %arg1[%0] : memref<2xi32, #tpu.memory_space<smem>>
    %c0 = arith.constant 0 : index
    %c0_0 = arith.constant 0 : index
    %2 = vector.load %arg3[%c0, %c0_0] : memref<16x6xf32, #tpu.memory_space<vmem>>, vector<16x6xf32>
    %c0_1 = arith.constant 0 : index
    %c0_2 = arith.constant 0 : index
    %3 = vector.load %arg2[%c0_1, %c0_2] : memref<16x1xf32, #tpu.memory_space<vmem>>, vector<16x1xf32>
    %c0_3 = arith.constant 0 : index
    %c0_4 = arith.constant 0 : index
    %4 = vector.load %arg5[%c0_3, %c0_4] : memref<6x128xf32, #tpu.memory_space<vmem>>, vector<6x128xf32>
    %c0_5 = arith.constant 0 : index
    %c0_6 = arith.constant 0 : index
    %5 = vector.load %arg7[%c0_5, %c0_6] : memref<32x6xf32, #tpu.memory_space<vmem>>, vector<32x6xf32>
    %c0_7 = arith.constant 0 : index
    %c0_8 = arith.constant 0 : index
    %c0_9 = arith.constant 0 : index
    %6 = vector.load %arg4[%c0_7, %c0_8, %c0_9] : memref<4x16x16xf32, #tpu.memory_space<vmem>>, vector<1x16x16xf32>
    %7 = vector.shape_cast %6 : vector<1x16x16xf32> to vector<16x16xf32>
    %c1 = arith.constant 1 : index
    %c0_10 = arith.constant 0 : index
    %c0_11 = arith.constant 0 : index
    %8 = vector.load %arg4[%c1, %c0_10, %c0_11] : memref<4x16x16xf32, #tpu.memory_space<vmem>>, vector<1x16x16xf32>
    %9 = vector.shape_cast %8 : vector<1x16x16xf32> to vector<16x16xf32>
    %c2 = arith.constant 2 : index
    %c0_12 = arith.constant 0 : index
    %c0_13 = arith.constant 0 : index
    %10 = vector.load %arg4[%c2, %c0_12, %c0_13] : memref<4x16x16xf32, #tpu.memory_space<vmem>>, vector<1x16x16xf32>
    %11 = vector.shape_cast %10 : vector<1x16x16xf32> to vector<16x16xf32>
    %c3 = arith.constant 3 : index
    %c0_14 = arith.constant 0 : index
    %c0_15 = arith.constant 0 : index
    %12 = vector.load %arg4[%c3, %c0_14, %c0_15] : memref<4x16x16xf32, #tpu.memory_space<vmem>>, vector<1x16x16xf32>
    %13 = vector.shape_cast %12 : vector<1x16x16xf32> to vector<16x16xf32>
    %c0_16 = arith.constant 0 : index
    %c0_17 = arith.constant 0 : index
    %14 = vector.load %arg6[%c0_16, %c0_17] : memref<1x32xf32, #tpu.memory_space<vmem>>, vector<1x32xf32>
    %15 = vector.shape_cast %14 : vector<1x32xf32> to vector<1x32xf32>
    %16 = vector.broadcast %15 : vector<1x32xf32> to vector<16x32xf32>
    %c0_18 = arith.constant 0 : index
    %c0_19 = arith.constant 0 : index
    %17 = vector.load %arg8[%c0_18, %c0_19] : memref<1x6xf32, #tpu.memory_space<vmem>>, vector<1x6xf32>
    %18 = vector.shape_cast %17 : vector<1x6xf32> to vector<1x6xf32>
    %19 = vector.broadcast %18 : vector<1x6xf32> to vector<16x6xf32>
    %c0_i32 = arith.constant 0 : i32
    %20 = arith.subi %1, %c0_i32 : i32
    %21 = arith.addi %c0_i32, %20 : i32
    %c1_i32 = arith.constant 1 : i32
    %22 = scf.for %arg10 = %c0_i32 to %21 step %c1_i32 iter_args(%arg11 = %2) -> (vector<16x6xf32>)  : i32 {
      %24 = arith.sitofp %arg10 : i32 to f32
      %cst = arith.constant 1.000000e+00 : f32
      %25 = arith.mulf %24, %cst : f32
      %cst_22 = arith.constant dense<0.000000e+00> : vector<16x128xf32>
      %26 = tpu.matmul %arg11, %4, %cst_22 {dimension_numbers = #tpu.dot_dimension_numbers<[1], [0], [0], [1], [0, 0, 1, 1], [], []>} : vector<16x6xf32>, vector<6x128xf32>, vector<16x128xf32> -> vector<16x128xf32>
      %27 = vector.extract_strided_slice %26 {offsets = [0, 0], sizes = [16, 32], strides = [1, 1]} : vector<16x128xf32> to vector<16x32xf32>
      %cst_23 = arith.constant dense<0.000000e+00> : vector<16x32xf32>
      %28 = tpu.matmul %7, %27, %cst_23 {dimension_numbers = #tpu.dot_dimension_numbers<[1], [0], [0], [1], [0, 0, 1, 1], [], []>} : vector<16x16xf32>, vector<16x32xf32>, vector<16x32xf32> -> vector<16x32xf32>
      %29 = arith.addf %16, %28 : vector<16x32xf32>
      %30 = vector.extract_strided_slice %26 {offsets = [0, 32], sizes = [16, 32], strides = [1, 1]} : vector<16x128xf32> to vector<16x32xf32>
      %cst_24 = arith.constant dense<0.000000e+00> : vector<16x32xf32>
      %31 = tpu.matmul %9, %30, %cst_24 {dimension_numbers = #tpu.dot_dimension_numbers<[1], [0], [0], [1], [0, 0, 1, 1], [], []>} : vector<16x16xf32>, vector<16x32xf32>, vector<16x32xf32> -> vector<16x32xf32>
      %32 = arith.addf %29, %31 : vector<16x32xf32>
      %33 = vector.extract_strided_slice %26 {offsets = [0, 64], sizes = [16, 32], strides = [1, 1]} : vector<16x128xf32> to vector<16x32xf32>
      %cst_25 = arith.constant dense<0.000000e+00> : vector<16x32xf32>
      %34 = tpu.matmul %11, %33, %cst_25 {dimension_numbers = #tpu.dot_dimension_numbers<[1], [0], [0], [1], [0, 0, 1, 1], [], []>} : vector<16x16xf32>, vector<16x32xf32>, vector<16x32xf32> -> vector<16x32xf32>
      %35 = arith.addf %32, %34 : vector<16x32xf32>
      %36 = vector.extract_strided_slice %26 {offsets = [0, 96], sizes = [16, 32], strides = [1, 1]} : vector<16x128xf32> to vector<16x32xf32>
      %cst_26 = arith.constant dense<0.000000e+00> : vector<16x32xf32>
      %37 = tpu.matmul %13, %36, %cst_26 {dimension_numbers = #tpu.dot_dimension_numbers<[1], [0], [0], [1], [0, 0, 1, 1], [], []>} : vector<16x16xf32>, vector<16x32xf32>, vector<16x32xf32> -> vector<16x32xf32>
      %38 = arith.addf %35, %37 : vector<16x32xf32>
      %39 = math.tanh %38 : vector<16x32xf32>
      %cst_27 = arith.constant dense<0.000000e+00> : vector<16x6xf32>
      %40 = tpu.matmul %39, %5, %cst_27 {dimension_numbers = #tpu.dot_dimension_numbers<[1], [0], [0], [1], [0, 0, 1, 1], [], []>} : vector<16x32xf32>, vector<32x6xf32>, vector<16x6xf32> -> vector<16x6xf32>
      %41 = arith.addf %40, %19 : vector<16x6xf32>
      %42 = vector.broadcast %25 : f32 to vector<16x1xf32>
      %43 = arith.subf %3, %42 : vector<16x1xf32>
      %cst_28 = arith.constant 0.000000e+00 : f32
      %44 = vector.broadcast %cst_28 : f32 to vector<16x1xf32>
      %45 = arith.maximumf %43, %44 : vector<16x1xf32>
      %cst_29 = arith.constant 1.000000e+00 : f32
      %46 = vector.broadcast %cst_29 : f32 to vector<16x1xf32>
      %47 = arith.minimumf %45, %46 : vector<16x1xf32>
      %48 = vector.broadcast %47 : vector<16x1xf32> to vector<16x6xf32>
      %49 = arith.mulf %48, %41 : vector<16x6xf32>
      %50 = arith.addf %arg11, %49 : vector<16x6xf32>
      scf.yield %50 : vector<16x6xf32>
    }
    %c0_20 = arith.constant 0 : index
    %c0_21 = arith.constant 0 : index
    %23 = vector.load %arg9[%c0_20, %c0_21] : memref<16x6xf32, #tpu.memory_space<vmem>>, vector<16x6xf32>
    tpu.vector_store %arg9[%c0_20, %c0_21], %22 {strides = array<i32>} : memref<16x6xf32, #tpu.memory_space<vmem>>, vector<16x6xf32>,
    return
  }
  func.func @transform_0(%arg0: i32, %arg1: memref<2xi32, #tpu.memory_space<smem>>) -> (i32, i32) {
    %c0_i32 = arith.constant 0 : i32
    %c0_i32_0 = arith.constant 0 : i32
    return %arg0, %c0_i32 : i32, i32
  }
  func.func @transform_1(%arg0: i32, %arg1: memref<2xi32, #tpu.memory_space<smem>>) -> (i32, i32) {
    %c0_i32 = arith.constant 0 : i32
    %c0_i32_0 = arith.constant 0 : i32
    return %arg0, %c0_i32 : i32, i32
  }
  func.func @transform_2(%arg0: i32, %arg1: memref<2xi32, #tpu.memory_space<smem>>) -> (i32, i32, i32) {
    %c0_i32 = arith.constant 0 : i32
    %c0_i32_0 = arith.constant 0 : i32
    %c0_i32_1 = arith.constant 0 : i32
    %c0_i32_2 = arith.constant 0 : i32
    return %c0_i32, %c0_i32_0, %c0_i32_1 : i32, i32, i32
  }
  func.func @transform_3(%arg0: i32, %arg1: memref<2xi32, #tpu.memory_space<smem>>) -> (i32, i32) {
    %c0_i32 = arith.constant 0 : i32
    %c0_i32_0 = arith.constant 0 : i32
    %c0_i32_1 = arith.constant 0 : i32
    return %c0_i32, %c0_i32_0 : i32, i32
  }
  func.func @transform_4(%arg0: i32, %arg1: memref<2xi32, #tpu.memory_space<smem>>) -> (i32, i32) {
    %c0_i32 = arith.constant 0 : i32
    %c0_i32_0 = arith.constant 0 : i32
    %c0_i32_1 = arith.constant 0 : i32
    return %c0_i32, %c0_i32_0 : i32, i32
  }
  func.func @transform_5(%arg0: i32, %arg1: memref<2xi32, #tpu.memory_space<smem>>) -> (i32, i32) {
    %c0_i32 = arith.constant 0 : i32
    %c0_i32_0 = arith.constant 0 : i32
    %c0_i32_1 = arith.constant 0 : i32
    return %c0_i32, %c0_i32_0 : i32, i32
  }
  func.func @transform_6(%arg0: i32, %arg1: memref<2xi32, #tpu.memory_space<smem>>) -> (i32, i32) {
    %c0_i32 = arith.constant 0 : i32
    %c0_i32_0 = arith.constant 0 : i32
    %c0_i32_1 = arith.constant 0 : i32
    return %c0_i32, %c0_i32_0 : i32, i32
  }
  func.func @transform_7(%arg0: i32, %arg1: memref<2xi32, #tpu.memory_space<smem>>) -> (i32, i32) {
    %c0_i32 = arith.constant 0 : i32
    %c0_i32_0 = arith.constant 0 : i32
    return %arg0, %c0_i32 : i32, i32
  }
}

</mosaic_0001>

<llo_original>
// kernel: tpu_custom_call.1
$region0: #{tpu_custom_call.1}
  #allocation0 [shape = 'u32[]', space=smem, size = 0x4, offset = 0x4, fixed_abs, tag = 'smem constant byte address 0x4 - core index']
  #allocation1 [shape = 'u32[144,128]{1,0:T(1,128)}', space=vmem, size = 0x12000, scoped, tag = 'internal scratch']
  #allocation2 [shape = 's32[1]{0}', space=sflag, size = 0x4, scoped, tag = 'scoped memory for tpu_custom_call.1']
  #allocation3 [shape = 'u8[512]{0}', space=smem, size = 0x200, scoped, tag = 'prefetched SMEM operand 0']
  %s0 = inlined_call_operand.vmem [shape: s32[2], index: 0, kind: input, shape index: {}]
  %s1 = inlined_call_operand.vmem [shape: f32[32,1], index: 1, kind: input, shape index: {}]
  %s2 = inlined_call_operand.vmem [shape: f32[32,6], index: 2, kind: input, shape index: {}]
  %s3 = inlined_call_operand.vmem [shape: f32[4,16,16], index: 3, kind: input, shape index: {}]
  %s4 = inlined_call_operand.vmem [shape: f32[6,128], index: 4, kind: input, shape index: {}]
  %s5 = inlined_call_operand.vmem [shape: f32[1,32], index: 5, kind: input, shape index: {}]
  %s6 = inlined_call_operand.vmem [shape: f32[32,6], index: 6, kind: input, shape index: {}]
  %s7 = inlined_call_operand.vmem [shape: f32[1,6], index: 7, kind: input, shape index: {}]
  %s8 = inlined_call_operand.vmem [shape: f32[32,6], index: 8, kind: output, shape index: {}]
  %s9 = sld [smem:[#allocation0]]
  $region68: #{tpu_custom_call.1} parent=0
    _
  %s11 = ssub.s32 1, %s9
  %s12 = scalar_select 0, %s11, %s9
  %s13 = sshll.u32 %s0, 4
  %s14 = int_to_ptr.vmem [resolvable:$true] %s13
  %16 = dma.vmem_to_smem %s14, 16, [#allocation3], [#allocation2]
  %17 = dma.done [#allocation2], 16
  %18 = sfence
  loop: start=0, step=1, limit=4
  $region2: #{tpu_custom_call.1} parent=0 // loop_pre_header
    _
  $region3: #{tpu_custom_call.1} parent=0 // loop_header
    %s20 = sphi 0, %s24
    %p21 = scmp.ge.s32.totalorder %s20, 4
    %s30 = sphi 0, %s32
    %s33 = sphi 0, %s30
    %s34 = sphi 0, %s33
    %s50 = sphi 0, %s34
    %s56 = sphi 0, %s58
    %s59 = sphi 0, %s56
    %s60 = sphi 0, %s59
    %s76 = sphi 0, %s60
    %s80 = sphi 0, %s80
    %s82 = sphi 0, %s80
    %s83 = sphi 0, %s82
    %s97 = sphi 0, %s83
    %s101 = sphi 0, %s101
    %s103 = sphi 0, %s101
    %s104 = sphi 0, %s103
    %s118 = sphi 0, %s104
    %s122 = sphi 0, %s122
    %s124 = sphi 0, %s122
    %s125 = sphi 0, %s124
    %s139 = sphi 0, %s125
    %s143 = sphi 0, %s143
    %s145 = sphi 0, %s143
    %s146 = sphi 0, %s145
    %s160 = sphi 0, %s146
    %s164 = sphi 0, %s164
    %s166 = sphi 0, %s164
    %s167 = sphi 0, %s166
    %s181 = sphi 0, %s167
    %s187 = sphi 0, %s189
    %s190 = sphi 0, %s187
    %s191 = sphi 0, %s190
    %s207 = sphi 0, %s191
  $region4: #{tpu_custom_call.1} parent=0 // loop_header_branch
    %23 = sbr.rel (%p21) target = $region8
  $region5: #{tpu_custom_call.1} parent=0 // loop_body
    %s25 = ssub.s32 %s20, 1
    %s26 = ssub.s32 %s20, 2
    %s27 = sadd.s32 %s20, 1
    %s28 = ssub.s32 %s20, %s27
    %p29 = scmp.eq.s32.totalorder %s28, 0
    %s31 = sadd.s32 %s30, 1
    %s32 = scalar_select %p29, %s30, %s31
    %p35 = pneg %p29
    %p36 = scmp.eq.s32.totalorder %s20, 1
    %p37 = por %p35, %p36
    %p38 = scmp.ne.s32.totalorder %s30, %s33
    %p39 = scmp.eq.s32.totalorder %s20, 0
    %p40 = por %p38, %p39
    %p41 = scmp.ne.s32.totalorder %s30, %s33
    %p42 = scmp.eq.s32.totalorder %s25, 1
    %p43 = por %p41, %p42
    %p44 = scmp.ne.s32.totalorder %s33, %s34
    %p45 = scmp.eq.s32.totalorder %s25, 0
    %p46 = por %p44, %p45
    %p47 = scmp.ne.s32.totalorder %s33, %s34
    %p48 = scmp.eq.s32.totalorder %s26, 1
    %p49 = por %p47, %p48
    %p51 = scmp.ne.s32.totalorder %s34, %s50
    %p52 = scmp.eq.s32.totalorder %s26, 0
    %p53 = por %p51, %p52
    %s54 = ssub.s32 %s20, %s27
    %p55 = scmp.eq.s32.totalorder %s54, 0
    %s57 = sadd.s32 %s56, 1
    %s58 = scalar_select %p55, %s56, %s57
    %p61 = pneg %p55
    %p62 = scmp.eq.s32.totalorder %s20, 1
    %p63 = por %p61, %p62
    %p64 = scmp.ne.s32.totalorder %s56, %s59
    %p65 = scmp.eq.s32.totalorder %s20, 0
    %p66 = por %p64, %p65
    %p67 = scmp.ne.s32.totalorder %s56, %s59
    %p68 = scmp.eq.s32.totalorder %s25, 1
    %p69 = por %p67, %p68
    %p70 = scmp.ne.s32.totalorder %s59, %s60
    %p71 = scmp.eq.s32.totalorder %s25, 0
    %p72 = por %p70, %p71
    %p73 = scmp.ne.s32.totalorder %s59, %s60
    %p74 = scmp.eq.s32.totalorder %s26, 1
    %p75 = por %p73, %p74
    %p77 = scmp.ne.s32.totalorder %s60, %s76
    %p78 = scmp.eq.s32.totalorder %s26, 0
    %p79 = por %p77, %p78
    %s81 = sadd.s32 %s80, 1
    %p84 = scmp.eq.s32.totalorder %s20, 1
    %p85 = scmp.ne.s32.totalorder %s80, %s82
    %p86 = scmp.eq.s32.totalorder %s20, 0
    %p87 = por %p85, %p86
    %p88 = scmp.ne.s32.totalorder %s80, %s82
    %p89 = scmp.eq.s32.totalorder %s25, 1
    %p90 = por %p88, %p89
    %p91 = scmp.ne.s32.totalorder %s82, %s83
    %p92 = scmp.eq.s32.totalorder %s25, 0
    %p93 = por %p91, %p92
    %p94 = scmp.ne.s32.totalorder %s82, %s83
    %p95 = scmp.eq.s32.totalorder %s26, 1
    %p96 = por %p94, %p95
    %p98 = scmp.ne.s32.totalorder %s83, %s97
    %p99 = scmp.eq.s32.totalorder %s26, 0
    %p100 = por %p98, %p99
    %s102 = sadd.s32 %s101, 1
    %p105 = scmp.eq.s32.totalorder %s20, 1
    %p106 = scmp.ne.s32.totalorder %s101, %s103
    %p107 = scmp.eq.s32.totalorder %s20, 0
    %p108 = por %p106, %p107
    %p109 = scmp.ne.s32.totalorder %s101, %s103
    %p110 = scmp.eq.s32.totalorder %s25, 1
    %p111 = por %p109, %p110
    %p112 = scmp.ne.s32.totalorder %s103, %s104
    %p113 = scmp.eq.s32.totalorder %s25, 0
    %p114 = por %p112, %p113
    %p115 = scmp.ne.s32.totalorder %s103, %s104
    %p116 = scmp.eq.s32.totalorder %s26, 1
    %p117 = por %p115, %p116
    %p119 = scmp.ne.s32.totalorder %s104, %s118
    %p120 = scmp.eq.s32.totalorder %s26, 0
    %p121 = por %p119, %p120
    %s123 = sadd.s32 %s122, 1
    %p126 = scmp.eq.s32.totalorder %s20, 1
    %p127 = scmp.ne.s32.totalorder %s122, %s124
    %p128 = scmp.eq.s32.totalorder %s20, 0
    %p129 = por %p127, %p128
    %p130 = scmp.ne.s32.totalorder %s122, %s124
    %p131 = scmp.eq.s32.totalorder %s25, 1
    %p132 = por %p130, %p131
    %p133 = scmp.ne.s32.totalorder %s124, %s125
    %p134 = scmp.eq.s32.totalorder %s25, 0
    %p135 = por %p133, %p134
    %p136 = scmp.ne.s32.totalorder %s124, %s125
    %p137 = scmp.eq.s32.totalorder %s26, 1
    %p138 = por %p136, %p137
    %p140 = scmp.ne.s32.totalorder %s125, %s139
    %p141 = scmp.eq.s32.totalorder %s26, 0
    %p142 = por %p140, %p141
    %s144 = sadd.s32 %s143, 1
    %p147 = scmp.eq.s32.totalorder %s20, 1
    %p148 = scmp.ne.s32.totalorder %s143, %s145
    %p149 = scmp.eq.s32.totalorder %s20, 0
    %p150 = por %p148, %p149
    %p151 = scmp.ne.s32.totalorder %s143, %s145
    %p152 = scmp.eq.s32.totalorder %s25, 1
    %p153 = por %p151, %p152
    %p154 = scmp.ne.s32.totalorder %s145, %s146
    %p155 = scmp.eq.s32.totalorder %s25, 0
    %p156 = por %p154, %p155
    %p157 = scmp.ne.s32.totalorder %s145, %s146
    %p158 = scmp.eq.s32.totalorder %s26, 1
    %p159 = por %p157, %p158
    %p161 = scmp.ne.s32.totalorder %s146, %s160
    %p162 = scmp.eq.s32.totalorder %s26, 0
    %p163 = por %p161, %p162
    %s165 = sadd.s32 %s164, 1
    %p168 = scmp.eq.s32.totalorder %s20, 1
    %p169 = scmp.ne.s32.totalorder %s164, %s166
    %p170 = scmp.eq.s32.totalorder %s20, 0
    %p171 = por %p169, %p170
    %p172 = scmp.ne.s32.totalorder %s164, %s166
    %p173 = scmp.eq.s32.totalorder %s25, 1
    %p174 = por %p172, %p173
    %p175 = scmp.ne.s32.totalorder %s166, %s167
    %p176 = scmp.eq.s32.totalorder %s25, 0
    %p177 = por %p175, %p176
    %p178 = scmp.ne.s32.totalorder %s166, %s167
    %p179 = scmp.eq.s32.totalorder %s26, 1
    %p180 = por %p178, %p179
    %p182 = scmp.ne.s32.totalorder %s167, %s181
    %p183 = scmp.eq.s32.totalorder %s26, 0
    %p184 = por %p182, %p183
    %s185 = ssub.s32 %s20, %s27
    %p186 = scmp.eq.s32.totalorder %s185, 0
    %s188 = sadd.s32 %s187, 1
    %s189 = scalar_select %p186, %s187, %s188
    %p192 = pneg %p186
    %p193 = scmp.eq.s32.totalorder %s20, 1
    %p194 = por %p192, %p193
    %p195 = scmp.ne.s32.totalorder %s187, %s190
    %p196 = scmp.eq.s32.totalorder %s20, 0
    %p197 = por %p195, %p196
    %p198 = scmp.ne.s32.totalorder %s187, %s190
    %p199 = scmp.eq.s32.totalorder %s25, 1
    %p200 = por %p198, %p199
    %p201 = scmp.ne.s32.totalorder %s190, %s191
    %p202 = scmp.eq.s32.totalorder %s25, 0
    %p203 = por %p201, %p202
    %p204 = scmp.ne.s32.totalorder %s190, %s191
    %p205 = scmp.eq.s32.totalorder %s26, 1
    %p206 = por %p204, %p205
    %p208 = scmp.ne.s32.totalorder %s191, %s207
    %p209 = scmp.eq.s32.totalorder %s26, 0
    %p210 = por %p208, %p209
    %p211 = scmp.le.s32.totalorder 1, %s20
    %p212 = scmp.lt.s32.totalorder %s20, 3
    %p213 = pnand %p211, %p212
    %p214 = pneg %p213
    // Predicated region
    $region9: #{tpu_custom_call.1} parent=5 // pred_check
      _
    $region10: #{tpu_custom_call.1} parent=5 // pred_check_branch
      %216 = sbr.rel (%p213) target = $region12
    $region11: #{tpu_custom_call.1} parent=5 // pred_region
      %s217 = ssub.s32 %s20, 1
      // Predicated region
      $region13: #{tpu_custom_call.1} parent=11 // pred_check
        %p218 = pneg %p93
      $region14: #{tpu_custom_call.1} parent=11 // pred_check_branch
        %220 = sbr.rel (%p218) target = $region16
      $region15: #{tpu_custom_call.1} parent=11 // pred_region
        _
      $region16: #{tpu_custom_call.1} parent=11 // pred_fallthru
        _
      // Predicated region
      $region17: #{tpu_custom_call.1} parent=11 // pred_check
        %p221 = pneg %p114
      $region18: #{tpu_custom_call.1} parent=11 // pred_check_branch
        %223 = sbr.rel (%p221) target = $region20
      $region19: #{tpu_custom_call.1} parent=11 // pred_region
        _
      $region20: #{tpu_custom_call.1} parent=11 // pred_fallthru
        _
      // Predicated region
      $region21: #{tpu_custom_call.1} parent=11 // pred_check
        %p224 = pneg %p135
      $region22: #{tpu_custom_call.1} parent=11 // pred_check_branch
        %226 = sbr.rel (%p224) target = $region24
      $region23: #{tpu_custom_call.1} parent=11 // pred_region
        _
      $region24: #{tpu_custom_call.1} parent=11 // pred_fallthru
        _
      // Predicated region
      $region25: #{tpu_custom_call.1} parent=11 // pred_check
        %p227 = pneg %p156
      $region26: #{tpu_custom_call.1} parent=11 // pred_check_branch
        %229 = sbr.rel (%p227) target = $region28
      $region27: #{tpu_custom_call.1} parent=11 // pred_region
        _
      $region28: #{tpu_custom_call.1} parent=11 // pred_fallthru
        _
      // Predicated region
      $region29: #{tpu_custom_call.1} parent=11 // pred_check
        %p230 = pneg %p177
      $region30: #{tpu_custom_call.1} parent=11 // pred_check_branch
        %232 = sbr.rel (%p230) target = $region32
      $region31: #{tpu_custom_call.1} parent=11 // pred_region
        _
      $region32: #{tpu_custom_call.1} parent=11 // pred_fallthru
        _
    $region12: #{tpu_custom_call.1} parent=5 // pred_fallthru
      _
    %p233 = scmp.lt.s32.totalorder %s20, 2
    // Predicated region
    $region33: #{tpu_custom_call.1} parent=5 // pred_check
      %p234 = pneg %p233
    $region34: #{tpu_custom_call.1} parent=5 // pred_check_branch
      %236 = sbr.rel (%p234) target = $region36
    $region35: #{tpu_custom_call.1} parent=5 // pred_region
      // Predicated region
      $region37: #{tpu_custom_call.1} parent=35 // pred_check
        %p237 = pneg %p40
      $region38: #{tpu_custom_call.1} parent=35 // pred_check_branch
        %239 = sbr.rel (%p237) target = $region40
      $region39: #{tpu_custom_call.1} parent=35 // pred_region
        %s240 = smul.u32 2, %s20
        %p241 = scmp.lt.s32.totalorder %s240, 3
        %s242 = scalar_select %p241, %s240, 3
        %s243 = smul.addr %s242, 8
        %s244 = scalar_lea.vmem %s1, %s243
        %s245 = smul.u32 2, %s20
      $region40: #{tpu_custom_call.1} parent=35 // pred_fallthru
        _
      // Predicated region
      $region41: #{tpu_custom_call.1} parent=35 // pred_check
        %p246 = pneg %p66
      $region42: #{tpu_custom_call.1} parent=35 // pred_check_branch
        %248 = sbr.rel (%p246) target = $region44
      $region43: #{tpu_custom_call.1} parent=35 // pred_region
        %s249 = smul.u32 2, %s20
        %p250 = scmp.lt.s32.totalorder %s249, 3
        %s251 = scalar_select %p250, %s249, 3
        %s252 = smul.addr %s251, 8
        %s253 = scalar_lea.vmem %s2, %s252
        %s254 = smul.u32 2, %s20
      $region44: #{tpu_custom_call.1} parent=35 // pred_fallthru
        _
    $region36: #{tpu_custom_call.1} parent=5 // pred_fallthru
      _
    %p255 = scmp.le.s32.totalorder 1, %s20
    %p256 = scmp.lt.s32.totalorder %s20, 3
    %p257 = pnand %p255, %p256
    %p258 = pneg %p257
    // Predicated region
    $region45: #{tpu_custom_call.1} parent=5 // pred_check
      _
    $region46: #{tpu_custom_call.1} parent=5 // pred_check_branch
      %260 = sbr.rel (%p257) target = $region48
    $region47: #{tpu_custom_call.1} parent=5 // pred_region
      %s261 = ssub.s32 %s20, 1
      %s262 = smul.u32 2, %s25
      %p263 = scmp.lt.s32.totalorder %s262, 3
      %s264 = scalar_select %p263, %s262, 3
      %s265 = smul.addr %s264, 8
      %s266 = scalar_lea.vmem %s1, %s265
      %p267 = pneg %p46
      %p268 = pneg %p43
      %s269 = smul.u32 2, %s25
      %p270 = scmp.lt.s32.totalorder %s269, 3
      %s271 = scalar_select %p270, %s269, 3
      %s272 = smul.addr %s271, 8
      %s273 = scalar_lea.vmem %s2, %s272
      %p274 = pneg %p72
      %p275 = pneg %p69
      %p276 = pneg %p93
      %p277 = pneg %p90
      %p278 = pneg %p114
      %p279 = pneg %p111
      %p280 = pneg %p135
      %p281 = pneg %p132
      %p282 = pneg %p156
      %p283 = pneg %p153
      %p284 = pneg %p177
      %p285 = pneg %p174
      %p286 = pneg %p203
      %p287 = pneg %p200
      %s288 = smul.u32 2, %s25
      %p289 = scmp.lt.s32.totalorder %s288, 3
      %s290 = scalar_select %p289, %s288, 3
      %s291 = smul.addr %s290, 8
      %s292 = scalar_lea.vmem %s8, %s291
      %s293 = smul.u32 2, %s25
      %p294 = scmp.lt.s32.totalorder %s293, 3
      %s295 = scalar_select %p294, %s293, 3
      %s296 = smul.addr %s295, 8
      %s297 = scalar_lea.vmem %s1, %s296
      %s298 = smul.u32 2, %s25
      %s299 = smul.u32 2, %s25
      %p300 = scmp.lt.s32.totalorder %s299, 3
      %s301 = scalar_select %p300, %s299, 3
      %s302 = smul.addr %s301, 8
      %s303 = scalar_lea.vmem %s2, %s302
      %s304 = smul.u32 2, %s25
      %s305 = smul.u32 2, %s25
      %p306 = scmp.lt.s32.totalorder %s305, 3
      %s307 = scalar_select %p306, %s305, 3
      %s308 = smul.addr %s307, 8
      %s309 = scalar_lea.vmem %s8, %s308
      %s310 = smul.u32 2, %s25
      %s311 = sld [smem:[#allocation3 + %s25]]
      %v312 = vld [vmem:[%s303] sm:$0xff]
      %v313 = vld [vmem:[%s303 + $0x8] sm:$0xff]
      %v314 = vld [vmem:[%s297] sm:$0xff]
      %v315 = vld [vmem:[%s297 + $0x8] sm:$0xff]
      %v316 = vld [vmem:[%s4] sm:$0x3f]
      %v317 = vld [vmem:[%s6] sm:$0xff]
      %v318 = vld [vmem:[%s6 + $0x8] sm:$0xff]
      %v319 = vld [vmem:[%s6 + $0x10] sm:$0xff]
      %v320 = vld [vmem:[%s6 + $0x18] sm:$0xff]
      %v321 = vld [vmem:[%s3] sm:$0xff]
      %v322 = vld [vmem:[%s3 + $0x8] sm:$0xff]
      %s323 = scalar_lea.vmem %s3, 16
      %v324 = vld [vmem:[%s323] sm:$0xff]
      %v325 = vld [vmem:[%s323 + $0x8] sm:$0xff]
      %s326 = scalar_lea.vmem %s3, 32
      %v327 = vld [vmem:[%s326] sm:$0xff]
      %v328 = vld [vmem:[%s326 + $0x8] sm:$0xff]
      %s329 = scalar_lea.vmem %s3, 48
      %v330 = vld [vmem:[%s329] sm:$0xff]
      %v331 = vld [vmem:[%s329 + $0x8] sm:$0xff]
      %v332 = vld [vmem:[%s5] sm:$0x1]
      %v334 = vlaneseq
      %v335 = vshrl.u32 %v334, 7
      %v336 = vsub.s32 0, %v335
      %v337 = vrot.slane %v332, %v336
      %v339 = vld [vmem:[%s7] sm:$0x1]
      %v341 = vlaneseq
      %v342 = vshrl.u32 %v341, 7
      %v343 = vsub.s32 0, %v342
      %v344 = vrot.slane %v339, %v343
      // While loop
      $region49: #{tpu_custom_call.1} parent=47 // loop_pre_header
        _
      $region50: #{tpu_custom_call.1} parent=47 // loop_header
        %s347 = sphi 0, %s349
        %p348 = scmp.ge.s32.totalorder %s347, %s311
        %v352 = vphi %v312, %v897
        %v353 = vphi %v313, %v898
      $region51: #{tpu_custom_call.1} parent=47 // loop_header_branch
        %351 = sbr.rel (%p348) target = $region55
      $region52: #{tpu_custom_call.1} parent=47 // loop_body
        %s354 = scvt.s32.f32 %s347
        %vm355 = vcmask 48128
        %v357 = vsel %vm355, %v352, 0
        %v360 = vsel %vm355, %v353, 0
        %vm362 = vcmask 1045504
        %v364 = vsel %vm362, %v316, 0
        %366 = vmatprep.subr.mxu0 0.0
        %367 = vmatpush1.msra.mxu0 %v364
        %368 = vmatprep.subr.mxu0 0.0
        %369 = vmatpush1.msra.mxu0 0.0
        %370 = vmatprep.subr.mxu0 0.0
        %371 = vmatpush1.msra.mxu0 0.0
        %372 = vmatprep.subr.mxu0 0.0
        %373 = vmatpush1.msra.mxu0 0.0
        %374 = vmatprep.subr.mxu0 0.0
        %375 = vmatpush1.msra.mxu0 0.0
        %376 = vmatprep.subr.mxu0 0.0
        %377 = vmatpush1.msra.mxu0 0.0
        %378 = vmatprep.subr.mxu0 0.0
        %379 = vmatpush1.msra.mxu0 0.0
        %380 = vmatprep.subr.mxu0 0.0
        %381 = vmatpush1.msra.mxu0 0.0
        %382 = vmatprep.subr.mxu0 0.0
        %383 = vmatpush1.msra.mxu0 0.0
        %384 = vmatprep.subr.mxu0 0.0
        %385 = vmatpush1.msra.mxu0 0.0
        %386 = vmatprep.subr.mxu0 0.0
        %387 = vmatpush1.msra.mxu0 0.0
        %388 = vmatprep.subr.mxu0 0.0
        %389 = vmatpush1.msra.mxu0 0.0
        %390 = vmatprep.subr.mxu0 0.0
        %391 = vmatpush1.msra.mxu0 0.0
        %392 = vmatprep.subr.mxu0 0.0
        %393 = vmatpush1.msra.mxu0 0.0
        %394 = vmatprep.subr.mxu0 0.0
        %395 = vmatpush1.msra.mxu0 0.0
        %396 = vmatprep.subr.mxu0 0.0
        %397 = vmatpush1.msra.mxu0 0.0
        %398 = vmatprep.subr.mxu0 0.0
        %399 = vmatpush1.msra.mxu0 0.0
        %400 = vmatprep.subr.mxu0 0.0
        %401 = vmatpush1.msra.mxu0 0.0
        %402 = vmatprep.subr.mxu0 0.0
        %403 = vmatpush1.msra.mxu0 0.0
        %404 = vmatprep.subr.mxu0 0.0
        %405 = vmatpush1.msra.mxu0 0.0
        %406 = vmatprep.subr.mxu0 0.0
        %407 = vmatpush1.msra.mxu0 0.0
        %408 = vmatprep.subr.mxu0 0.0
        %409 = vmatpush1.msra.mxu0 0.0
        %410 = vmatprep.subr.mxu0 0.0
        %411 = vmatpush1.msra.mxu0 0.0
        %412 = vmatprep.subr.mxu0 0.0
        %413 = vmatpush1.msra.mxu0 0.0
        %414 = vmatprep.subr.mxu0 0.0
        %415 = vmatpush1.msra.mxu0 0.0
        %416 = vmatprep.subr.mxu0 0.0
        %417 = vmatpush1.msra.mxu0 0.0
        %418 = vmatprep.subr.mxu0 0.0
        %419 = vmatpush1.msra.mxu0 0.0
        %420 = vmatprep.subr.mxu0 0.0
        %421 = vmatpush1.msra.mxu0 0.0
        %422 = vmatprep.subr.mxu0 0.0
        %423 = vmatpush1.msra.mxu0 0.0
        %424 = vmatprep.subr.mxu0 0.0
        %425 = vmatpush1.msra.mxu0 0.0
        %426 = vmatprep.subr.mxu0 0.0
        %427 = vmatpush1.msra.mxu0 0.0
        %428 = vmatprep.subr.mxu0 0.0
        %429 = vmatpush1.msra.mxu0 0.0
        %430 = vmatprep.mubr.f32.mxu0 0.0
        %431 = vmatmul.mubr.f32.gmra.mrb[0].mxu0 %v357
        %v432 = vpop.f32.mrb[0].mxu0
        %v433 = vadd.f32 0.0, %v432
        %v434 = vpop.f32.mrb[0].mxu0
        %435 = vmatprep.mubr.f32.mxu0 0.0
        %436 = vmatmul.mubr.f32.gmra.mrb[0].mxu0 %v360
        %v437 = vpop.f32.mrb[0].mxu0
        %v438 = vadd.f32 0.0, %v437
        %v439 = vpop.f32.mrb[0].mxu0
        %440 = vdwg.mxu0
        %vm441 = vcmask 130048
        %v443 = vsel %vm441, %v321, 0
        %v446 = vsel %vm441, %v322, 0
        %448 = vmatprep.subr.mxu0 0.0
        %449 = vmatpush1.msra.mxu0 %v433
        %450 = vmatprep.subr.mxu0 0.0
        %451 = vmatpush1.msra.mxu0 %v438
        %452 = vmatprep.subr.mxu0 0.0
        %453 = vmatpush1.msra.mxu0 0.0
        %454 = vmatprep.subr.mxu0 0.0
        %455 = vmatpush1.msra.mxu0 0.0
        %456 = vmatprep.subr.mxu0 0.0
        %457 = vmatpush1.msra.mxu0 0.0
        %458 = vmatprep.subr.mxu0 0.0
        %459 = vmatpush1.msra.mxu0 0.0
        %460 = vmatprep.subr.mxu0 0.0
        %461 = vmatpush1.msra.mxu0 0.0
        %462 = vmatprep.subr.mxu0 0.0
        %463 = vmatpush1.msra.mxu0 0.0
        %464 = vmatprep.subr.mxu0 0.0
        %465 = vmatpush1.msra.mxu0 0.0
        %466 = vmatprep.subr.mxu0 0.0
        %467 = vmatpush1.msra.mxu0 0.0
        %468 = vmatprep.subr.mxu0 0.0
        %469 = vmatpush1.msra.mxu0 0.0
        %470 = vmatprep.subr.mxu0 0.0
        %471 = vmatpush1.msra.mxu0 0.0
        %472 = vmatprep.subr.mxu0 0.0
        %473 = vmatpush1.msra.mxu0 0.0
        %474 = vmatprep.subr.mxu0 0.0
        %475 = vmatpush1.msra.mxu0 0.0
        %476 = vmatprep.subr.mxu0 0.0
        %477 = vmatpush1.msra.mxu0 0.0
        %478 = vmatprep.subr.mxu0 0.0
        %479 = vmatpush1.msra.mxu0 0.0
        %480 = vmatprep.subr.mxu0 0.0
        %481 = vmatpush1.msra.mxu0 0.0
        %482 = vmatprep.subr.mxu0 0.0
        %483 = vmatpush1.msra.mxu0 0.0
        %484 = vmatprep.subr.mxu0 0.0
        %485 = vmatpush1.msra.mxu0 0.0
        %486 = vmatprep.subr.mxu0 0.0
        %487 = vmatpush1.msra.mxu0 0.0
        %488 = vmatprep.subr.mxu0 0.0
        %489 = vmatpush1.msra.mxu0 0.0
        %490 = vmatprep.subr.mxu0 0.0
        %491 = vmatpush1.msra.mxu0 0.0
        %492 = vmatprep.subr.mxu0 0.0
        %493 = vmatpush1.msra.mxu0 0.0
        %494 = vmatprep.subr.mxu0 0.0
        %495 = vmatpush1.msra.mxu0 0.0
        %496 = vmatprep.subr.mxu0 0.0
        %497 = vmatpush1.msra.mxu0 0.0
        %498 = vmatprep.subr.mxu0 0.0
        %499 = vmatpush1.msra.mxu0 0.0
        %500 = vmatprep.subr.mxu0 0.0
        %501 = vmatpush1.msra.mxu0 0.0
        %502 = vmatprep.subr.mxu0 0.0
        %503 = vmatpush1.msra.mxu0 0.0
        %504 = vmatprep.subr.mxu0 0.0
        %505 = vmatpush1.msra.mxu0 0.0
        %506 = vmatprep.subr.mxu0 0.0
        %507 = vmatpush1.msra.mxu0 0.0
        %508 = vmatprep.subr.mxu0 0.0
        %509 = vmatpush1.msra.mxu0 0.0
        %510 = vmatprep.subr.mxu0 0.0
        %511 = vmatpush1.msra.mxu0 0.0
        %512 = vmatprep.mubr.f32.mxu0 0.0
        %513 = vmatmul.mubr.f32.gmra.mrb[0].mxu0 %v443
        %v514 = vpop.f32.mrb[0].mxu0
        %v515 = vadd.f32 0.0, %v514
        %v516 = vpop.f32.mrb[0].mxu0
        %517 = vmatprep.mubr.f32.mxu0 0.0
        %518 = vmatmul.mubr.f32.gmra.mrb[0].mxu0 %v446
        %v519 = vpop.f32.mrb[0].mxu0
        %v520 = vadd.f32 0.0, %v519
        %v521 = vpop.f32.mrb[0].mxu0
        %522 = vdwg.mxu0
        %v523 = vadd.f32 %v337, %v515
        %v524 = vadd.f32 %v337, %v520
        %527 = vrot.lane.b32.xlu0 %v433, 96
        %v528 = vpop.permute.xlu0 %527
        %529 = vrot.lane.b32.xlu0 %v438, 96
        %v530 = vpop.permute.xlu0 %529
        %v534 = vsel %vm441, %v324, 0
        %v537 = vsel %vm441, %v325, 0
        %539 = vmatprep.subr.mxu0 0.0
        %540 = vmatpush1.msra.mxu0 %v528
        %541 = vmatprep.subr.mxu0 0.0
        %542 = vmatpush1.msra.mxu0 %v530
        %543 = vmatprep.subr.mxu0 0.0
        %544 = vmatpush1.msra.mxu0 0.0
        %545 = vmatprep.subr.mxu0 0.0
        %546 = vmatpush1.msra.mxu0 0.0
        %547 = vmatprep.subr.mxu0 0.0
        %548 = vmatpush1.msra.mxu0 0.0
        %549 = vmatprep.subr.mxu0 0.0
        %550 = vmatpush1.msra.mxu0 0.0
        %551 = vmatprep.subr.mxu0 0.0
        %552 = vmatpush1.msra.mxu0 0.0
        %553 = vmatprep.subr.mxu0 0.0
        %554 = vmatpush1.msra.mxu0 0.0
        %555 = vmatprep.subr.mxu0 0.0
        %556 = vmatpush1.msra.mxu0 0.0
        %557 = vmatprep.subr.mxu0 0.0
        %558 = vmatpush1.msra.mxu0 0.0
        %559 = vmatprep.subr.mxu0 0.0
        %560 = vmatpush1.msra.mxu0 0.0
        %561 = vmatprep.subr.mxu0 0.0
        %562 = vmatpush1.msra.mxu0 0.0
        %563 = vmatprep.subr.mxu0 0.0
        %564 = vmatpush1.msra.mxu0 0.0
        %565 = vmatprep.subr.mxu0 0.0
        %566 = vmatpush1.msra.mxu0 0.0
        %567 = vmatprep.subr.mxu0 0.0
        %568 = vmatpush1.msra.mxu0 0.0
        %569 = vmatprep.subr.mxu0 0.0
        %570 = vmatpush1.msra.mxu0 0.0
        %571 = vmatprep.subr.mxu0 0.0
        %572 = vmatpush1.msra.mxu0 0.0
        %573 = vmatprep.subr.mxu0 0.0
        %574 = vmatpush1.msra.mxu0 0.0
        %575 = vmatprep.subr.mxu0 0.0
        %576 = vmatpush1.msra.mxu0 0.0
        %577 = vmatprep.subr.mxu0 0.0
        %578 = vmatpush1.msra.mxu0 0.0
        %579 = vmatprep.subr.mxu0 0.0
        %580 = vmatpush1.msra.mxu0 0.0
        %581 = vmatprep.subr.mxu0 0.0
        %582 = vmatpush1.msra.mxu0 0.0
        %583 = vmatprep.subr.mxu0 0.0
        %584 = vmatpush1.msra.mxu0 0.0
        %585 = vmatprep.subr.mxu0 0.0
        %586 = vmatpush1.msra.mxu0 0.0
        %587 = vmatprep.subr.mxu0 0.0
        %588 = vmatpush1.msra.mxu0 0.0
        %589 = vmatprep.subr.mxu0 0.0
        %590 = vmatpush1.msra.mxu0 0.0
        %591 = vmatprep.subr.mxu0 0.0
        %592 = vmatpush1.msra.mxu0 0.0
        %593 = vmatprep.subr.mxu0 0.0
        %594 = vmatpush1.msra.mxu0 0.0
        %595 = vmatprep.subr.mxu0 0.0
        %596 = vmatpush1.msra.mxu0 0.0
        %597 = vmatprep.subr.mxu0 0.0
        %598 = vmatpush1.msra.mxu0 0.0
        %599 = vmatprep.subr.mxu0 0.0
        %600 = vmatpush1.msra.mxu0 0.0
        %601 = vmatprep.subr.mxu0 0.0
        %602 = vmatpush1.msra.mxu0 0.0
        %603 = vmatprep.mubr.f32.mxu0 0.0
        %604 = vmatmul.mubr.f32.gmra.mrb[0].mxu0 %v534
        %v605 = vpop.f32.mrb[0].mxu0
        %v606 = vadd.f32 0.0, %v605
        %v607 = vpop.f32.mrb[0].mxu0
        %608 = vmatprep.mubr.f32.mxu0 0.0
        %609 = vmatmul.mubr.f32.gmra.mrb[0].mxu0 %v537
        %v610 = vpop.f32.mrb[0].mxu0
        %v611 = vadd.f32 0.0, %v610
        %v612 = vpop.f32.mrb[0].mxu0
        %613 = vdwg.mxu0
        %v614 = vadd.f32 %v523, %v606
        %v615 = vadd.f32 %v524, %v611
        %616 = vrot.lane.b32.xlu0 %v433, 64
        %v617 = vpop.permute.xlu0 %616
        %618 = vrot.lane.b32.xlu0 %v438, 64
        %v619 = vpop.permute.xlu0 %618
        %v623 = vsel %vm441, %v327, 0
        %v626 = vsel %vm441, %v328, 0
        %628 = vmatprep.subr.mxu0 0.0
        %629 = vmatpush1.msra.mxu0 %v617
        %630 = vmatprep.subr.mxu0 0.0
        %631 = vmatpush1.msra.mxu0 %v619
        %632 = vmatprep.subr.mxu0 0.0
        %633 = vmatpush1.msra.mxu0 0.0
        %634 = vmatprep.subr.mxu0 0.0
        %635 = vmatpush1.msra.mxu0 0.0
        %636 = vmatprep.subr.mxu0 0.0
        %637 = vmatpush1.msra.mxu0 0.0
        %638 = vmatprep.subr.mxu0 0.0
        %639 = vmatpush1.msra.mxu0 0.0
        %640 = vmatprep.subr.mxu0 0.0
        %641 = vmatpush1.msra.mxu0 0.0
        %642 = vmatprep.subr.mxu0 0.0
        %643 = vmatpush1.msra.mxu0 0.0
        %644 = vmatprep.subr.mxu0 0.0
        %645 = vmatpush1.msra.mxu0 0.0
        %646 = vmatprep.subr.mxu0 0.0
        %647 = vmatpush1.msra.mxu0 0.0
        %648 = vmatprep.subr.mxu0 0.0
        %649 = vmatpush1.msra.mxu0 0.0
        %650 = vmatprep.subr.mxu0 0.0
        %651 = vmatpush1.msra.mxu0 0.0
        %652 = vmatprep.subr.mxu0 0.0
        %653 = vmatpush1.msra.mxu0 0.0
        %654 = vmatprep.subr.mxu0 0.0
        %655 = vmatpush1.msra.mxu0 0.0
        %656 = vmatprep.subr.mxu0 0.0
        %657 = vmatpush1.msra.mxu0 0.0
        %658 = vmatprep.subr.mxu0 0.0
        %659 = vmatpush1.msra.mxu0 0.0
        %660 = vmatprep.subr.mxu0 0.0
        %661 = vmatpush1.msra.mxu0 0.0
        %662 = vmatprep.subr.mxu0 0.0
        %663 = vmatpush1.msra.mxu0 0.0
        %664 = vmatprep.subr.mxu0 0.0
        %665 = vmatpush1.msra.mxu0 0.0
        %666 = vmatprep.subr.mxu0 0.0
        %667 = vmatpush1.msra.mxu0 0.0
        %668 = vmatprep.subr.mxu0 0.0
        %669 = vmatpush1.msra.mxu0 0.0
        %670 = vmatprep.subr.mxu0 0.0
        %671 = vmatpush1.msra.mxu0 0.0
        %672 = vmatprep.subr.mxu0 0.0
        %673 = vmatpush1.msra.mxu0 0.0
        %674 = vmatprep.subr.mxu0 0.0
        %675 = vmatpush1.msra.mxu0 0.0
        %676 = vmatprep.subr.mxu0 0.0
        %677 = vmatpush1.msra.mxu0 0.0
        %678 = vmatprep.subr.mxu0 0.0
        %679 = vmatpush1.msra.mxu0 0.0
        %680 = vmatprep.subr.mxu0 0.0
        %681 = vmatpush1.msra.mxu0 0.0
        %682 = vmatprep.subr.mxu0 0.0
        %683 = vmatpush1.msra.mxu0 0.0
        %684 = vmatprep.subr.mxu0 0.0
        %685 = vmatpush1.msra.mxu0 0.0
        %686 = vmatprep.subr.mxu0 0.0
        %687 = vmatpush1.msra.mxu0 0.0
        %688 = vmatprep.subr.mxu0 0.0
        %689 = vmatpush1.msra.mxu0 0.0
        %690 = vmatprep.subr.mxu0 0.0
        %691 = vmatpush1.msra.mxu0 0.0
        %692 = vmatprep.mubr.f32.mxu0 0.0
        %693 = vmatmul.mubr.f32.gmra.mrb[0].mxu0 %v623
        %v694 = vpop.f32.mrb[0].mxu0
        %v695 = vadd.f32 0.0, %v694
        %v696 = vpop.f32.mrb[0].mxu0
        %697 = vmatprep.mubr.f32.mxu0 0.0
        %698 = vmatmul.mubr.f32.gmra.mrb[0].mxu0 %v626
        %v699 = vpop.f32.mrb[0].mxu0
        %v700 = vadd.f32 0.0, %v699
        %v701 = vpop.f32.mrb[0].mxu0
        %702 = vdwg.mxu0
        %v703 = vadd.f32 %v614, %v695
        %v704 = vadd.f32 %v615, %v700
        %705 = vrot.lane.b32.xlu0 %v433, 32
        %v706 = vpop.permute.xlu0 %705
        %707 = vrot.lane.b32.xlu0 %v438, 32
        %v708 = vpop.permute.xlu0 %707
        %v712 = vsel %vm441, %v330, 0
        %v715 = vsel %vm441, %v331, 0
        %717 = vmatprep.subr.mxu0 0.0
        %718 = vmatpush1.msra.mxu0 %v706
        %719 = vmatprep.subr.mxu0 0.0
        %720 = vmatpush1.msra.mxu0 %v708
        %721 = vmatprep.subr.mxu0 0.0
        %722 = vmatpush1.msra.mxu0 0.0
        %723 = vmatprep.subr.mxu0 0.0
        %724 = vmatpush1.msra.mxu0 0.0
        %725 = vmatprep.subr.mxu0 0.0
        %726 = vmatpush1.msra.mxu0 0.0
        %727 = vmatprep.subr.mxu0 0.0
        %728 = vmatpush1.msra.mxu0 0.0
        %729 = vmatprep.subr.mxu0 0.0
        %730 = vmatpush1.msra.mxu0 0.0
        %731 = vmatprep.subr.mxu0 0.0
        %732 = vmatpush1.msra.mxu0 0.0
        %733 = vmatprep.subr.mxu0 0.0
        %734 = vmatpush1.msra.mxu0 0.0
        %735 = vmatprep.subr.mxu0 0.0
        %736 = vmatpush1.msra.mxu0 0.0
        %737 = vmatprep.subr.mxu0 0.0
        %738 = vmatpush1.msra.mxu0 0.0
        %739 = vmatprep.subr.mxu0 0.0
        %740 = vmatpush1.msra.mxu0 0.0
        %741 = vmatprep.subr.mxu0 0.0
        %742 = vmatpush1.msra.mxu0 0.0
        %743 = vmatprep.subr.mxu0 0.0
        %744 = vmatpush1.msra.mxu0 0.0
        %745 = vmatprep.subr.mxu0 0.0
        %746 = vmatpush1.msra.mxu0 0.0
        %747 = vmatprep.subr.mxu0 0.0
        %748 = vmatpush1.msra.mxu0 0.0
        %749 = vmatprep.subr.mxu0 0.0
        %750 = vmatpush1.msra.mxu0 0.0
        %751 = vmatprep.subr.mxu0 0.0
        %752 = vmatpush1.msra.mxu0 0.0
        %753 = vmatprep.subr.mxu0 0.0
        %754 = vmatpush1.msra.mxu0 0.0
        %755 = vmatprep.subr.mxu0 0.0
        %756 = vmatpush1.msra.mxu0 0.0
        %757 = vmatprep.subr.mxu0 0.0
        %758 = vmatpush1.msra.mxu0 0.0
        %759 = vmatprep.subr.mxu0 0.0
        %760 = vmatpush1.msra.mxu0 0.0
        %761 = vmatprep.subr.mxu0 0.0
        %762 = vmatpush1.msra.mxu0 0.0
        %763 = vmatprep.subr.mxu0 0.0
        %764 = vmatpush1.msra.mxu0 0.0
        %765 = vmatprep.subr.mxu0 0.0
        %766 = vmatpush1.msra.mxu0 0.0
        %767 = vmatprep.subr.mxu0 0.0
        %768 = vmatpush1.msra.mxu0 0.0
        %769 = vmatprep.subr.mxu0 0.0
        %770 = vmatpush1.msra.mxu0 0.0
        %771 = vmatprep.subr.mxu0 0.0
        %772 = vmatpush1.msra.mxu0 0.0
        %773 = vmatprep.subr.mxu0 0.0
        %774 = vmatpush1.msra.mxu0 0.0
        %775 = vmatprep.subr.mxu0 0.0
        %776 = vmatpush1.msra.mxu0 0.0
        %777 = vmatprep.subr.mxu0 0.0
        %778 = vmatpush1.msra.mxu0 0.0
        %779 = vmatprep.subr.mxu0 0.0
        %780 = vmatpush1.msra.mxu0 0.0
        %781 = vmatprep.mubr.f32.mxu0 0.0
        %782 = vmatmul.mubr.f32.gmra.mrb[0].mxu0 %v712
        %v783 = vpop.f32.mrb[0].mxu0
        %v784 = vadd.f32 0.0, %v783
        %v785 = vpop.f32.mrb[0].mxu0
        %786 = vmatprep.mubr.f32.mxu0 0.0
        %787 = vmatmul.mubr.f32.gmra.mrb[0].mxu0 %v715
        %v788 = vpop.f32.mrb[0].mxu0
        %v789 = vadd.f32 0.0, %v788
        %v790 = vpop.f32.mrb[0].mxu0
        %791 = vdwg.mxu0
        %v792 = vadd.f32 %v703, %v784
        %v793 = vadd.f32 %v704, %v789
        %v794 = vtanh.pop %v792
        %v795 = vtanh.pop %v793
        %vm796 = vcmask 261120
        %v798 = vsel %vm796, %v794, 0
        %v801 = vsel %vm796, %v795, 0
        %803 = vmatprep.subr.mxu0 0.0
        %804 = vmatpush1.msra.mxu0 %v317
        %805 = vmatprep.subr.mxu0 0.0
        %806 = vmatpush1.msra.mxu0 %v318
        %807 = vmatprep.subr.mxu0 0.0
        %808 = vmatpush1.msra.mxu0 %v319
        %809 = vmatprep.subr.mxu0 0.0
        %810 = vmatpush1.msra.mxu0 %v320
        %811 = vmatprep.subr.mxu0 0.0
        %812 = vmatpush1.msra.mxu0 0.0
        %813 = vmatprep.subr.mxu0 0.0
        %814 = vmatpush1.msra.mxu0 0.0
        %815 = vmatprep.subr.mxu0 0.0
        %816 = vmatpush1.msra.mxu0 0.0
        %817 = vmatprep.subr.mxu0 0.0
        %818 = vmatpush1.msra.mxu0 0.0
        %819 = vmatprep.subr.mxu0 0.0
        %820 = vmatpush1.msra.mxu0 0.0
        %821 = vmatprep.subr.mxu0 0.0
        %822 = vmatpush1.msra.mxu0 0.0
        %823 = vmatprep.subr.mxu0 0.0
        %824 = vmatpush1.msra.mxu0 0.0
        %825 = vmatprep.subr.mxu0 0.0
        %826 = vmatpush1.msra.mxu0 0.0
        %827 = vmatprep.subr.mxu0 0.0
        %828 = vmatpush1.msra.mxu0 0.0
        %829 = vmatprep.subr.mxu0 0.0
        %830 = vmatpush1.msra.mxu0 0.0
        %831 = vmatprep.subr.mxu0 0.0
        %832 = vmatpush1.msra.mxu0 0.0
        %833 = vmatprep.subr.mxu0 0.0
        %834 = vmatpush1.msra.mxu0 0.0
        %835 = vmatprep.subr.mxu0 0.0
        %836 = vmatpush1.msra.mxu0 0.0
        %837 = vmatprep.subr.mxu0 0.0
        %838 = vmatpush1.msra.mxu0 0.0
        %839 = vmatprep.subr.mxu0 0.0
        %840 = vmatpush1.msra.mxu0 0.0
        %841 = vmatprep.subr.mxu0 0.0
        %842 = vmatpush1.msra.mxu0 0.0
        %843 = vmatprep.subr.mxu0 0.0
        %844 = vmatpush1.msra.mxu0 0.0
        %845 = vmatprep.subr.mxu0 0.0
        %846 = vmatpush1.msra.mxu0 0.0
        %847 = vmatprep.subr.mxu0 0.0
        %848 = vmatpush1.msra.mxu0 0.0
        %849 = vmatprep.subr.mxu0 0.0
        %850 = vmatpush1.msra.mxu0 0.0
        %851 = vmatprep.subr.mxu0 0.0
        %852 = vmatpush1.msra.mxu0 0.0
        %853 = vmatprep.subr.mxu0 0.0
        %854 = vmatpush1.msra.mxu0 0.0
        %855 = vmatprep.subr.mxu0 0.0
        %856 = vmatpush1.msra.mxu0 0.0
        %857 = vmatprep.subr.mxu0 0.0
        %858 = vmatpush1.msra.mxu0 0.0
        %859 = vmatprep.subr.mxu0 0.0
        %860 = vmatpush1.msra.mxu0 0.0
        %861 = vmatprep.subr.mxu0 0.0
        %862 = vmatpush1.msra.mxu0 0.0
        %863 = vmatprep.subr.mxu0 0.0
        %864 = vmatpush1.msra.mxu0 0.0
        %865 = vmatprep.subr.mxu0 0.0
        %866 = vmatpush1.msra.mxu0 0.0
        %867 = vmatprep.mubr.f32.mxu0 0.0
        %868 = vmatmul.mubr.f32.gmra.mrb[0].mxu0 %v798
        %v869 = vpop.f32.mrb[0].mxu0
        %v870 = vadd.f32 %v344, %v869
        %v871 = vpop.f32.mrb[0].mxu0
        %872 = vmatprep.mubr.f32.mxu0 0.0
        %873 = vmatmul.mubr.f32.gmra.mrb[0].mxu0 %v801
        %v874 = vpop.f32.mrb[0].mxu0
        %v875 = vadd.f32 %v344, %v874
        %v876 = vpop.f32.mrb[0].mxu0
        %877 = vdwg.mxu0
        %v878 = vstv %s354
        %v879 = vsub.f32 %v314, %v878
        %v880 = vsub.f32 %v315, %v878
        %v881 = vmax.f32 %v879, 0.0
        %v882 = vmax.f32 %v880, 0.0
        %v883 = vmin.f32 %v881, 1.0
        %v884 = vmin.f32 %v882, 1.0
        %886 = vset.pattern.permute.xlu0 0
        %887 = vperm.xlu0 %886, %v883
        %v888 = vpop.permute.xlu0 %887
        %891 = vset.pattern.permute.xlu0 0
        %892 = vperm.xlu0 %891, %v884
        %v893 = vpop.permute.xlu0 %892
        %v895 = vmul.f32 %v888, %v870
        %v896 = vmul.f32 %v893, %v875
        %v897 = vadd.f32 %v352, %v895
        %v898 = vadd.f32 %v353, %v896
      $region53: #{tpu_custom_call.1} parent=47 // loop_footer
        %s349 = sadd.s32 %s347, 1
      $region54: #{tpu_custom_call.1} parent=47 // loop_footer_branch
        %346 = sbr.rel target = $region50
      $region55: #{tpu_custom_call.1} parent=47 // loop_exit
        _
      %vm899 = vcmask 48128
      %900 = vst.msk [vmem:[%s309] sm:$0xff] %vm899, %v352
      %901 = vst.msk [vmem:[%s309 + $0x8] sm:$0xff] %vm899, %v353
      %s902 = smul.u32 2, %s25
      %p903 = scmp.lt.s32.totalorder %s902, 3
      %s904 = scalar_select %p903, %s902, 3
      %s905 = smul.addr %s904, 8
      %s906 = scalar_lea.vmem %s8, %s905
      // Predicated region
      $region56: #{tpu_custom_call.1} parent=47 // pred_check
        %p907 = pneg %p200
      $region57: #{tpu_custom_call.1} parent=47 // pred_check_branch
        %909 = sbr.rel (%p907) target = $region59
      $region58: #{tpu_custom_call.1} parent=47 // pred_region
        %s910 = smul.u32 2, %s25
      $region59: #{tpu_custom_call.1} parent=47 // pred_fallthru
        _
    $region48: #{tpu_custom_call.1} parent=5 // pred_fallthru
      _
    %p911 = scmp.le.s32.totalorder 2, %s20
    // Predicated region
    $region60: #{tpu_custom_call.1} parent=5 // pred_check
      %p912 = pneg %p911
    $region61: #{tpu_custom_call.1} parent=5 // pred_check_branch
      %914 = sbr.rel (%p912) target = $region63
    $region62: #{tpu_custom_call.1} parent=5 // pred_region
      %s915 = ssub.s32 %s20, 2
      // Predicated region
      $region64: #{tpu_custom_call.1} parent=62 // pred_check
        %p916 = pneg %p206
      $region65: #{tpu_custom_call.1} parent=62 // pred_check_branch
        %918 = sbr.rel (%p916) target = $region67
      $region66: #{tpu_custom_call.1} parent=62 // pred_region
        %s919 = smul.u32 2, %s26
        %p920 = scmp.lt.s32.totalorder %s919, 3
        %s921 = scalar_select %p920, %s919, 3
        %s922 = smul.addr %s921, 8
        %s923 = scalar_lea.vmem %s8, %s922
      $region67: #{tpu_custom_call.1} parent=62 // pred_fallthru
        _
    $region63: #{tpu_custom_call.1} parent=5 // pred_fallthru
      _
  $region6: #{tpu_custom_call.1} parent=0 // loop_footer
    %s24 = sadd.s32 1, %s20
  $region7: #{tpu_custom_call.1} parent=0 // loop_footer_branch
    %19 = sbr.rel target = $region3
  $region8: #{tpu_custom_call.1} parent=0 // loop_exit
    _

// kernel: tpu_custom_call.1
$region0: #{tpu_custom_call.1}
  #allocation0 [shape = 'u32[]', space=smem, size = 0x4, offset = 0x4, fixed_abs, tag = 'smem constant byte address 0x4 - core index']
  #allocation1 [shape = 'u32[144,128]{1,0:T(1,128)}', space=vmem, size = 0x12000, scoped, tag = 'internal scratch']
  #allocation2 [shape = 's32[1]{0}', space=sflag, size = 0x4, scoped, tag = 'scoped memory for tpu_custom_call.1']
  #allocation3 [shape = 'u8[512]{0}', space=smem, size = 0x200, scoped, tag = 'prefetched SMEM operand 0']
  %s0 = inlined_call_operand.vmem [shape: s32[2], index: 0, kind: input, shape index: {}]
  %s1 = inlined_call_operand.vmem [shape: f32[32,1], index: 1, kind: input, shape index: {}]
  %s2 = inlined_call_operand.vmem [shape: f32[32,6], index: 2, kind: input, shape index: {}]
  %s3 = inlined_call_operand.vmem [shape: f32[4,16,16], index: 3, kind: input, shape index: {}]
  %s4 = inlined_call_operand.vmem [shape: f32[6,128], index: 4, kind: input, shape index: {}]
  %s5 = inlined_call_operand.vmem [shape: f32[1,32], index: 5, kind: input, shape index: {}]
  %s6 = inlined_call_operand.vmem [shape: f32[32,6], index: 6, kind: input, shape index: {}]
  %s7 = inlined_call_operand.vmem [shape: f32[1,6], index: 7, kind: input, shape index: {}]
  %s8 = inlined_call_operand.vmem [shape: f32[32,6], index: 8, kind: output, shape index: {}]
  %s9 = sld [smem:[#allocation0]]
  $region68: #{tpu_custom_call.1} parent=0
    _
  %s11 = ssub.s32 1, %s9
  %s12 = scalar_select 0, %s11, %s9
  %s13 = sshll.u32 %s0, 4
  %s14 = int_to_ptr.vmem [resolvable:$true] %s13
  %16 = dma.vmem_to_smem %s14, 16, [#allocation3], [#allocation2]
  %17 = dma.done [#allocation2], 16
  %18 = sfence
  loop: start=0, step=1, limit=4
  $region2: #{tpu_custom_call.1} parent=0 // loop_pre_header
    _
  $region3: #{tpu_custom_call.1} parent=0 // loop_header
    %s20 = sphi 0, %s24
    %p21 = scmp.ge.s32.totalorder %s20, 4
    %s30 = sphi 0, %s32
    %s33 = sphi 0, %s30
    %s34 = sphi 0, %s33
    %s50 = sphi 0, %s34
    %s56 = sphi 0, %s58
    %s59 = sphi 0, %s56
    %s60 = sphi 0, %s59
    %s76 = sphi 0, %s60
    %s80 = sphi 0, %s80
    %s82 = sphi 0, %s80
    %s83 = sphi 0, %s82
    %s97 = sphi 0, %s83
    %s101 = sphi 0, %s101
    %s103 = sphi 0, %s101
    %s104 = sphi 0, %s103
    %s118 = sphi 0, %s104
    %s122 = sphi 0, %s122
    %s124 = sphi 0, %s122
    %s125 = sphi 0, %s124
    %s139 = sphi 0, %s125
    %s143 = sphi 0, %s143
    %s145 = sphi 0, %s143
    %s146 = sphi 0, %s145
    %s160 = sphi 0, %s146
    %s164 = sphi 0, %s164
    %s166 = sphi 0, %s164
    %s167 = sphi 0, %s166
    %s181 = sphi 0, %s167
    %s187 = sphi 0, %s189
    %s190 = sphi 0, %s187
    %s191 = sphi 0, %s190
    %s207 = sphi 0, %s191
  $region4: #{tpu_custom_call.1} parent=0 // loop_header_branch
    %23 = sbr.rel (%p21) target = $region8
  $region5: #{tpu_custom_call.1} parent=0 // loop_body
    %s25 = ssub.s32 %s20, 1
    %s26 = ssub.s32 %s20, 2
    %s27 = sadd.s32 %s20, 1
    %s28 = ssub.s32 %s20, %s27
    %p29 = scmp.eq.s32.totalorder %s28, 0
    %s31 = sadd.s32 %s30, 1
    %s32 = scalar_select %p29, %s30, %s31
    %p35 = pneg %p29
    %p36 = scmp.eq.s32.totalorder %s20, 1
    %p37 = por %p35, %p36
    %p38 = scmp.ne.s32.totalorder %s30, %s33
    %p39 = scmp.eq.s32.totalorder %s20, 0
    %p40 = por %p38, %p39
    %p41 = scmp.ne.s32.totalorder %s30, %s33
    %p42 = scmp.eq.s32.totalorder %s25, 1
    %p43 = por %p41, %p42
    %p44 = scmp.ne.s32.totalorder %s33, %s34
    %p45 = scmp.eq.s32.totalorder %s25, 0
    %p46 = por %p44, %p45
    %p47 = scmp.ne.s32.totalorder %s33, %s34
    %p48 = scmp.eq.s32.totalorder %s26, 1
    %p49 = por %p47, %p48
    %p51 = scmp.ne.s32.totalorder %s34, %s50
    %p52 = scmp.eq.s32.totalorder %s26, 0
    %p53 = por %p51, %p52
    %s54 = ssub.s32 %s20, %s27
    %p55 = scmp.eq.s32.totalorder %s54, 0
    %s57 = sadd.s32 %s56, 1
    %s58 = scalar_select %p55, %s56, %s57
    %p61 = pneg %p55
    %p62 = scmp.eq.s32.totalorder %s20, 1
    %p63 = por %p61, %p62
    %p64 = scmp.ne.s32.totalorder %s56, %s59
    %p65 = scmp.eq.s32.totalorder %s20, 0
    %p66 = por %p64, %p65
    %p67 = scmp.ne.s32.totalorder %s56, %s59
    %p68 = scmp.eq.s32.totalorder %s25, 1
    %p69 = por %p67, %p68
    %p70 = scmp.ne.s32.totalorder %s59, %s60
    %p71 = scmp.eq.s32.totalorder %s25, 0
    %p72 = por %p70, %p71
    %p73 = scmp.ne.s32.totalorder %s59, %s60
    %p74 = scmp.eq.s32.totalorder %s26, 1
    %p75 = por %p73, %p74
    %p77 = scmp.ne.s32.totalorder %s60, %s76
    %p78 = scmp.eq.s32.totalorder %s26, 0
    %p79 = por %p77, %p78
    %s81 = sadd.s32 %s80, 1
    %p84 = scmp.eq.s32.totalorder %s20, 1
    %p85 = scmp.ne.s32.totalorder %s80, %s82
    %p86 = scmp.eq.s32.totalorder %s20, 0
    %p87 = por %p85, %p86
    %p88 = scmp.ne.s32.totalorder %s80, %s82
    %p89 = scmp.eq.s32.totalorder %s25, 1
    %p90 = por %p88, %p89
    %p91 = scmp.ne.s32.totalorder %s82, %s83
    %p92 = scmp.eq.s32.totalorder %s25, 0
    %p93 = por %p91, %p92
    %p94 = scmp.ne.s32.totalorder %s82, %s83
    %p95 = scmp.eq.s32.totalorder %s26, 1
    %p96 = por %p94, %p95
    %p98 = scmp.ne.s32.totalorder %s83, %s97
    %p99 = scmp.eq.s32.totalorder %s26, 0
    %p100 = por %p98, %p99
    %s102 = sadd.s32 %s101, 1
    %p105 = scmp.eq.s32.totalorder %s20, 1
    %p106 = scmp.ne.s32.totalorder %s101, %s103
    %p107 = scmp.eq.s32.totalorder %s20, 0
    %p108 = por %p106, %p107
    %p109 = scmp.ne.s32.totalorder %s101, %s103
    %p110 = scmp.eq.s32.totalorder %s25, 1
    %p111 = por %p109, %p110
    %p112 = scmp.ne.s32.totalorder %s103, %s104
    %p113 = scmp.eq.s32.totalorder %s25, 0
    %p114 = por %p112, %p113
    %p115 = scmp.ne.s32.totalorder %s103, %s104
    %p116 = scmp.eq.s32.totalorder %s26, 1
    %p117 = por %p115, %p116
    %p119 = scmp.ne.s32.totalorder %s104, %s118
    %p120 = scmp.eq.s32.totalorder %s26, 0
    %p121 = por %p119, %p120
    %s123 = sadd.s32 %s122, 1
    %p126 = scmp.eq.s32.totalorder %s20, 1
    %p127 = scmp.ne.s32.totalorder %s122, %s124
    %p128 = scmp.eq.s32.totalorder %s20, 0
    %p129 = por %p127, %p128
    %p130 = scmp.ne.s32.totalorder %s122, %s124
    %p131 = scmp.eq.s32.totalorder %s25, 1
    %p132 = por %p130, %p131
    %p133 = scmp.ne.s32.totalorder %s124, %s125
    %p134 = scmp.eq.s32.totalorder %s25, 0
    %p135 = por %p133, %p134
    %p136 = scmp.ne.s32.totalorder %s124, %s125
    %p137 = scmp.eq.s32.totalorder %s26, 1
    %p138 = por %p136, %p137
    %p140 = scmp.ne.s32.totalorder %s125, %s139
    %p141 = scmp.eq.s32.totalorder %s26, 0
    %p142 = por %p140, %p141
    %s144 = sadd.s32 %s143, 1
    %p147 = scmp.eq.s32.totalorder %s20, 1
    %p148 = scmp.ne.s32.totalorder %s143, %s145
    %p149 = scmp.eq.s32.totalorder %s20, 0
    %p150 = por %p148, %p149
    %p151 = scmp.ne.s32.totalorder %s143, %s145
    %p152 = scmp.eq.s32.totalorder %s25, 1
    %p153 = por %p151, %p152
    %p154 = scmp.ne.s32.totalorder %s145, %s146
    %p155 = scmp.eq.s32.totalorder %s25, 0
    %p156 = por %p154, %p155
    %p157 = scmp.ne.s32.totalorder %s145, %s146
    %p158 = scmp.eq.s32.totalorder %s26, 1
    %p159 = por %p157, %p158
    %p161 = scmp.ne.s32.totalorder %s146, %s160
    %p162 = scmp.eq.s32.totalorder %s26, 0
    %p163 = por %p161, %p162
    %s165 = sadd.s32 %s164, 1
    %p168 = scmp.eq.s32.totalorder %s20, 1
    %p169 = scmp.ne.s32.totalorder %s164, %s166
    %p170 = scmp.eq.s32.totalorder %s20, 0
    %p171 = por %p169, %p170
    %p172 = scmp.ne.s32.totalorder %s164, %s166
    %p173 = scmp.eq.s32.totalorder %s25, 1
    %p174 = por %p172, %p173
    %p175 = scmp.ne.s32.totalorder %s166, %s167
    %p176 = scmp.eq.s32.totalorder %s25, 0
    %p177 = por %p175, %p176
    %p178 = scmp.ne.s32.totalorder %s166, %s167
    %p179 = scmp.eq.s32.totalorder %s26, 1
    %p180 = por %p178, %p179
    %p182 = scmp.ne.s32.totalorder %s167, %s181
    %p183 = scmp.eq.s32.totalorder %s26, 0
    %p184 = por %p182, %p183
    %s185 = ssub.s32 %s20, %s27
    %p186 = scmp.eq.s32.totalorder %s185, 0
    %s188 = sadd.s32 %s187, 1
    %s189 = scalar_select %p186, %s187, %s188
    %p192 = pneg %p186
    %p193 = scmp.eq.s32.totalorder %s20, 1
    %p194 = por %p192, %p193
    %p195 = scmp.ne.s32.totalorder %s187, %s190
    %p196 = scmp.eq.s32.totalorder %s20, 0
    %p197 = por %p195, %p196
    %p198 = scmp.ne.s32.totalorder %s187, %s190
    %p199 = scmp.eq.s32.totalorder %s25, 1
    %p200 = por %p198, %p199
    %p201 = scmp.ne.s32.totalorder %s190, %s191
    %p202 = scmp.eq.s32.totalorder %s25, 0
    %p203 = por %p201, %p202
    %p204 = scmp.ne.s32.totalorder %s190, %s191
    %p205 = scmp.eq.s32.totalorder %s26, 1
    %p206 = por %p204, %p205
    %p208 = scmp.ne.s32.totalorder %s191, %s207
    %p209 = scmp.eq.s32.totalorder %s26, 0
    %p210 = por %p208, %p209
    %p211 = scmp.le.s32.totalorder 1, %s20
    %p212 = scmp.lt.s32.totalorder %s20, 3
    %p213 = pnand %p211, %p212
    %p214 = pneg %p213
    // Predicated region
    $region9: #{tpu_custom_call.1} parent=5 // pred_check
      _
    $region10: #{tpu_custom_call.1} parent=5 // pred_check_branch
      %216 = sbr.rel (%p213) target = $region12
    $region11: #{tpu_custom_call.1} parent=5 // pred_region
      %s217 = ssub.s32 %s20, 1
      // Predicated region
      $region13: #{tpu_custom_call.1} parent=11 // pred_check
        %p218 = pneg %p93
      $region14: #{tpu_custom_call.1} parent=11 // pred_check_branch
        %220 = sbr.rel (%p218) target = $region16
      $region15: #{tpu_custom_call.1} parent=11 // pred_region
        _
      $region16: #{tpu_custom_call.1} parent=11 // pred_fallthru
        _
      // Predicated region
      $region17: #{tpu_custom_call.1} parent=11 // pred_check
        %p221 = pneg %p114
      $region18: #{tpu_custom_call.1} parent=11 // pred_check_branch
        %223 = sbr.rel (%p221) target = $region20
      $region19: #{tpu_custom_call.1} parent=11 // pred_region
        _
      $region20: #{tpu_custom_call.1} parent=11 // pred_fallthru
        _
      // Predicated region
      $region21: #{tpu_custom_call.1} parent=11 // pred_check
        %p224 = pneg %p135
      $region22: #{tpu_custom_call.1} parent=11 // pred_check_branch
        %226 = sbr.rel (%p224) target = $region24
      $region23: #{tpu_custom_call.1} parent=11 // pred_region
        _
      $region24: #{tpu_custom_call.1} parent=11 // pred_fallthru
        _
      // Predicated region
      $region25: #{tpu_custom_call.1} parent=11 // pred_check
        %p227 = pneg %p156
      $region26: #{tpu_custom_call.1} parent=11 // pred_check_branch
        %229 = sbr.rel (%p227) target = $region28
      $region27: #{tpu_custom_call.1} parent=11 // pred_region
        _
      $region28: #{tpu_custom_call.1} parent=11 // pred_fallthru
        _
      // Predicated region
      $region29: #{tpu_custom_call.1} parent=11 // pred_check
        %p230 = pneg %p177
      $region30: #{tpu_custom_call.1} parent=11 // pred_check_branch
        %232 = sbr.rel (%p230) target = $region32
      $region31: #{tpu_custom_call.1} parent=11 // pred_region
        _
      $region32: #{tpu_custom_call.1} parent=11 // pred_fallthru
        _
    $region12: #{tpu_custom_call.1} parent=5 // pred_fallthru
      _
    %p233 = scmp.lt.s32.totalorder %s20, 2
    // Predicated region
    $region33: #{tpu_custom_call.1} parent=5 // pred_check
      %p234 = pneg %p233
    $region34: #{tpu_custom_call.1} parent=5 // pred_check_branch
      %236 = sbr.rel (%p234) target = $region36
    $region35: #{tpu_custom_call.1} parent=5 // pred_region
      // Predicated region
      $region37: #{tpu_custom_call.1} parent=35 // pred_check
        %p237 = pneg %p40
      $region38: #{tpu_custom_call.1} parent=35 // pred_check_branch
        %239 = sbr.rel (%p237) target = $region40
      $region39: #{tpu_custom_call.1} parent=35 // pred_region
        %s240 = smul.u32 2, %s20
        %p241 = scmp.lt.s32.totalorder %s240, 3
        %s242 = scalar_select %p241, %s240, 3
        %s243 = smul.addr %s242, 8
        %s244 = scalar_lea.vmem %s1, %s243
        %s245 = smul.u32 2, %s20
      $region40: #{tpu_custom_call.1} parent=35 // pred_fallthru
        _
      // Predicated region
      $region41: #{tpu_custom_call.1} parent=35 // pred_check
        %p246 = pneg %p66
      $region42: #{tpu_custom_call.1} parent=35 // pred_check_branch
        %248 = sbr.rel (%p246) target = $region44
      $region43: #{tpu_custom_call.1} parent=35 // pred_region
        %s249 = smul.u32 2, %s20
        %p250 = scmp.lt.s32.totalorder %s249, 3
        %s251 = scalar_select %p250, %s249, 3
        %s252 = smul.addr %s251, 8
        %s253 = scalar_lea.vmem %s2, %s252
        %s254 = smul.u32 2, %s20
      $region44: #{tpu_custom_call.1} parent=35 // pred_fallthru
        _
    $region36: #{tpu_custom_call.1} parent=5 // pred_fallthru
      _
    %p255 = scmp.le.s32.totalorder 1, %s20
    %p256 = scmp.lt.s32.totalorder %s20, 3
    %p257 = pnand %p255, %p256
    %p258 = pneg %p257
    // Predicated region
    $region45: #{tpu_custom_call.1} parent=5 // pred_check
      _
    $region46: #{tpu_custom_call.1} parent=5 // pred_check_branch
      %260 = sbr.rel (%p257) target = $region48
    $region47: #{tpu_custom_call.1} parent=5 // pred_region
      %s261 = ssub.s32 %s20, 1
      %s262 = smul.u32 2, %s25
      %p263 = scmp.lt.s32.totalorder %s262, 3
      %s264 = scalar_select %p263, %s262, 3
      %s265 = smul.addr %s264, 8
      %s266 = scalar_lea.vmem %s1, %s265
      %p267 = pneg %p46
      %p268 = pneg %p43
      %s269 = smul.u32 2, %s25
      %p270 = scmp.lt.s32.totalorder %s269, 3
      %s271 = scalar_select %p270, %s269, 3
      %s272 = smul.addr %s271, 8
      %s273 = scalar_lea.vmem %s2, %s272
      %p274 = pneg %p72
      %p275 = pneg %p69
      %p276 = pneg %p93
      %p277 = pneg %p90
      %p278 = pneg %p114
      %p279 = pneg %p111
      %p280 = pneg %p135
      %p281 = pneg %p132
      %p282 = pneg %p156
      %p283 = pneg %p153
      %p284 = pneg %p177
      %p285 = pneg %p174
      %p286 = pneg %p203
      %p287 = pneg %p200
      %s288 = smul.u32 2, %s25
      %p289 = scmp.lt.s32.totalorder %s288, 3
      %s290 = scalar_select %p289, %s288, 3
      %s291 = smul.addr %s290, 8
      %s292 = scalar_lea.vmem %s8, %s291
      %s293 = smul.u32 2, %s25
      %p294 = scmp.lt.s32.totalorder %s293, 3
      %s295 = scalar_select %p294, %s293, 3
      %s296 = smul.addr %s295, 8
      %s297 = scalar_lea.vmem %s1, %s296
      %s298 = smul.u32 2, %s25
      %s299 = smul.u32 2, %s25
      %p300 = scmp.lt.s32.totalorder %s299, 3
      %s301 = scalar_select %p300, %s299, 3
      %s302 = smul.addr %s301, 8
      %s303 = scalar_lea.vmem %s2, %s302
      %s304 = smul.u32 2, %s25
      %s305 = smul.u32 2, %s25
      %p306 = scmp.lt.s32.totalorder %s305, 3
      %s307 = scalar_select %p306, %s305, 3
      %s308 = smul.addr %s307, 8
      %s309 = scalar_lea.vmem %s8, %s308
      %s310 = smul.u32 2, %s25
      %s311 = sld [smem:[#allocation3 + %s25]]
      %v312 = vld [vmem:[%s303] sm:$0xff]
      %v313 = vld [vmem:[%s303 + $0x8] sm:$0xff]
      %v314 = vld [vmem:[%s297] sm:$0xff]
      %v315 = vld [vmem:[%s297 + $0x8] sm:$0xff]
      %v316 = vld [vmem:[%s4] sm:$0x3f]
      %v317 = vld [vmem:[%s6] sm:$0xff]
      %v318 = vld [vmem:[%s6 + $0x8] sm:$0xff]
      %v319 = vld [vmem:[%s6 + $0x10] sm:$0xff]
      %v320 = vld [vmem:[%s6 + $0x18] sm:$0xff]
      %v321 = vld [vmem:[%s3] sm:$0xff]
      %v322 = vld [vmem:[%s3 + $0x8] sm:$0xff]
      %s323 = scalar_lea.vmem %s3, 16
      %v324 = vld [vmem:[%s323] sm:$0xff]
      %v325 = vld [vmem:[%s323 + $0x8] sm:$0xff]
      %s326 = scalar_lea.vmem %s3, 32
      %v327 = vld [vmem:[%s326] sm:$0xff]
      %v328 = vld [vmem:[%s326 + $0x8] sm:$0xff]
      %s329 = scalar_lea.vmem %s3, 48
      %v330 = vld [vmem:[%s329] sm:$0xff]
      %v331 = vld [vmem:[%s329 + $0x8] sm:$0xff]
      %v332 = vld [vmem:[%s5] sm:$0x1]
      %v334 = vlaneseq
      %v335 = vshrl.u32 %v334, 7
      %v336 = vsub.s32 0, %v335
      %v337 = vrot.slane %v332, %v336
      %v339 = vld [vmem:[%s7] sm:$0x1]
      %v341 = vlaneseq
      %v342 = vshrl.u32 %v341, 7
      %v343 = vsub.s32 0, %v342
      %v344 = vrot.slane %v339, %v343
      // While loop
      $region49: #{tpu_custom_call.1} parent=47 // loop_pre_header
        _
      $region50: #{tpu_custom_call.1} parent=47 // loop_header
        %s347 = sphi 0, %s349
        %p348 = scmp.ge.s32.totalorder %s347, %s311
        %v352 = vphi %v312, %v897
        %v353 = vphi %v313, %v898
      $region51: #{tpu_custom_call.1} parent=47 // loop_header_branch
        %351 = sbr.rel (%p348) target = $region55
      $region52: #{tpu_custom_call.1} parent=47 // loop_body
        %s354 = scvt.s32.f32 %s347
        %vm355 = vcmask 48128
        %v357 = vsel %vm355, %v352, 0
        %v360 = vsel %vm355, %v353, 0
        %vm362 = vcmask 1045504
        %v364 = vsel %vm362, %v316, 0
        %366 = vmatprep.subr.mxu0 0.0
        %367 = vmatpush1.msra.mxu0 %v364
        %368 = vmatprep.subr.mxu0 0.0
        %369 = vmatpush1.msra.mxu0 0.0
        %370 = vmatprep.subr.mxu0 0.0
        %371 = vmatpush1.msra.mxu0 0.0
        %372 = vmatprep.subr.mxu0 0.0
        %373 = vmatpush1.msra.mxu0 0.0
        %374 = vmatprep.subr.mxu0 0.0
        %375 = vmatpush1.msra.mxu0 0.0
        %376 = vmatprep.subr.mxu0 0.0
        %377 = vmatpush1.msra.mxu0 0.0
        %378 = vmatprep.subr.mxu0 0.0
        %379 = vmatpush1.msra.mxu0 0.0
        %380 = vmatprep.subr.mxu0 0.0
        %381 = vmatpush1.msra.mxu0 0.0
        %382 = vmatprep.subr.mxu0 0.0
        %383 = vmatpush1.msra.mxu0 0.0
        %384 = vmatprep.subr.mxu0 0.0
        %385 = vmatpush1.msra.mxu0 0.0
        %386 = vmatprep.subr.mxu0 0.0
        %387 = vmatpush1.msra.mxu0 0.0
        %388 = vmatprep.subr.mxu0 0.0
        %389 = vmatpush1.msra.mxu0 0.0
        %390 = vmatprep.subr.mxu0 0.0
        %391 = vmatpush1.msra.mxu0 0.0
        %392 = vmatprep.subr.mxu0 0.0
        %393 = vmatpush1.msra.mxu0 0.0
        %394 = vmatprep.subr.mxu0 0.0
        %395 = vmatpush1.msra.mxu0 0.0
        %396 = vmatprep.subr.mxu0 0.0
        %397 = vmatpush1.msra.mxu0 0.0
        %398 = vmatprep.subr.mxu0 0.0
        %399 = vmatpush1.msra.mxu0 0.0
        %400 = vmatprep.subr.mxu0 0.0
        %401 = vmatpush1.msra.mxu0 0.0
        %402 = vmatprep.subr.mxu0 0.0
        %403 = vmatpush1.msra.mxu0 0.0
        %404 = vmatprep.subr.mxu0 0.0
        %405 = vmatpush1.msra.mxu0 0.0
        %406 = vmatprep.subr.mxu0 0.0
        %407 = vmatpush1.msra.mxu0 0.0
        %408 = vmatprep.subr.mxu0 0.0
        %409 = vmatpush1.msra.mxu0 0.0
        %410 = vmatprep.subr.mxu0 0.0
        %411 = vmatpush1.msra.mxu0 0.0
        %412 = vmatprep.subr.mxu0 0.0
        %413 = vmatpush1.msra.mxu0 0.0
        %414 = vmatprep.subr.mxu0 0.0
        %415 = vmatpush1.msra.mxu0 0.0
        %416 = vmatprep.subr.mxu0 0.0
        %417 = vmatpush1.msra.mxu0 0.0
        %418 = vmatprep.subr.mxu0 0.0
        %419 = vmatpush1.msra.mxu0 0.0
        %420 = vmatprep.subr.mxu0 0.0
        %421 = vmatpush1.msra.mxu0 0.0
        %422 = vmatprep.subr.mxu0 0.0
        %423 = vmatpush1.msra.mxu0 0.0
        %424 = vmatprep.subr.mxu0 0.0
        %425 = vmatpush1.msra.mxu0 0.0
        %426 = vmatprep.subr.mxu0 0.0
        %427 = vmatpush1.msra.mxu0 0.0
        %428 = vmatprep.subr.mxu0 0.0
        %429 = vmatpush1.msra.mxu0 0.0
        %430 = vmatprep.mubr.f32.mxu0 0.0
        %431 = vmatmul.mubr.f32.gmra.mrb[0].mxu0 %v357
        %v432 = vpop.f32.mrb[0].mxu0
        %v433 = vadd.f32 0.0, %v432
        %v434 = vpop.f32.mrb[0].mxu0
        %435 = vmatprep.mubr.f32.mxu0 0.0
        %436 = vmatmul.mubr.f32.gmra.mrb[0].mxu0 %v360
        %v437 = vpop.f32.mrb[0].mxu0
        %v438 = vadd.f32 0.0, %v437
        %v439 = vpop.f32.mrb[0].mxu0
        %440 = vdwg.mxu0
        %vm441 = vcmask 130048
        %v443 = vsel %vm441, %v321, 0
        %v446 = vsel %vm441, %v322, 0
        %448 = vmatprep.subr.mxu0 0.0
        %449 = vmatpush1.msra.mxu0 %v433
        %450 = vmatprep.subr.mxu0 0.0
        %451 = vmatpush1.msra.mxu0 %v438
        %452 = vmatprep.subr.mxu0 0.0
        %453 = vmatpush1.msra.mxu0 0.0
        %454 = vmatprep.subr.mxu0 0.0
        %455 = vmatpush1.msra.mxu0 0.0
        %456 = vmatprep.subr.mxu0 0.0
        %457 = vmatpush1.msra.mxu0 0.0
        %458 = vmatprep.subr.mxu0 0.0
        %459 = vmatpush1.msra.mxu0 0.0
        %460 = vmatprep.subr.mxu0 0.0
        %461 = vmatpush1.msra.mxu0 0.0
        %462 = vmatprep.subr.mxu0 0.0
        %463 = vmatpush1.msra.mxu0 0.0
        %464 = vmatprep.subr.mxu0 0.0
        %465 = vmatpush1.msra.mxu0 0.0
        %466 = vmatprep.subr.mxu0 0.0
        %467 = vmatpush1.msra.mxu0 0.0
        %468 = vmatprep.subr.mxu0 0.0
        %469 = vmatpush1.msra.mxu0 0.0
        %470 = vmatprep.subr.mxu0 0.0
        %471 = vmatpush1.msra.mxu0 0.0
        %472 = vmatprep.subr.mxu0 0.0
        %473 = vmatpush1.msra.mxu0 0.0
        %474 = vmatprep.subr.mxu0 0.0
        %475 = vmatpush1.msra.mxu0 0.0
        %476 = vmatprep.subr.mxu0 0.0
        %477 = vmatpush1.msra.mxu0 0.0
        %478 = vmatprep.subr.mxu0 0.0
        %479 = vmatpush1.msra.mxu0 0.0
        %480 = vmatprep.subr.mxu0 0.0
        %481 = vmatpush1.msra.mxu0 0.0
        %482 = vmatprep.subr.mxu0 0.0
        %483 = vmatpush1.msra.mxu0 0.0
        %484 = vmatprep.subr.mxu0 0.0
        %485 = vmatpush1.msra.mxu0 0.0
        %486 = vmatprep.subr.mxu0 0.0
        %487 = vmatpush1.msra.mxu0 0.0
        %488 = vmatprep.subr.mxu0 0.0
        %489 = vmatpush1.msra.mxu0 0.0
        %490 = vmatprep.subr.mxu0 0.0
        %491 = vmatpush1.msra.mxu0 0.0
        %492 = vmatprep.subr.mxu0 0.0
        %493 = vmatpush1.msra.mxu0 0.0
        %494 = vmatprep.subr.mxu0 0.0
        %495 = vmatpush1.msra.mxu0 0.0
        %496 = vmatprep.subr.mxu0 0.0
        %497 = vmatpush1.msra.mxu0 0.0
        %498 = vmatprep.subr.mxu0 0.0
        %499 = vmatpush1.msra.mxu0 0.0
        %500 = vmatprep.subr.mxu0 0.0
        %501 = vmatpush1.msra.mxu0 0.0
        %502 = vmatprep.subr.mxu0 0.0
        %503 = vmatpush1.msra.mxu0 0.0
        %504 = vmatprep.subr.mxu0 0.0
        %505 = vmatpush1.msra.mxu0 0.0
        %506 = vmatprep.subr.mxu0 0.0
        %507 = vmatpush1.msra.mxu0 0.0
        %508 = vmatprep.subr.mxu0 0.0
        %509 = vmatpush1.msra.mxu0 0.0
        %510 = vmatprep.subr.mxu0 0.0
        %511 = vmatpush1.msra.mxu0 0.0
        %512 = vmatprep.mubr.f32.mxu0 0.0
        %513 = vmatmul.mubr.f32.gmra.mrb[0].mxu0 %v443
        %v514 = vpop.f32.mrb[0].mxu0
        %v515 = vadd.f32 0.0, %v514
        %v516 = vpop.f32.mrb[0].mxu0
        %517 = vmatprep.mubr.f32.mxu0 0.0
        %518 = vmatmul.mubr.f32.gmra.mrb[0].mxu0 %v446
        %v519 = vpop.f32.mrb[0].mxu0
        %v520 = vadd.f32 0.0, %v519
        %v521 = vpop.f32.mrb[0].mxu0
        %522 = vdwg.mxu0
        %v523 = vadd.f32 %v337, %v515
        %v524 = vadd.f32 %v337, %v520
        %527 = vrot.lane.b32.xlu0 %v433, 96
        %v528 = vpop.permute.xlu0 %527
        %529 = vrot.lane.b32.xlu0 %v438, 96
        %v530 = vpop.permute.xlu0 %529
        %v534 = vsel %vm441, %v324, 0
        %v537 = vsel %vm441, %v325, 0
        %539 = vmatprep.subr.mxu0 0.0
        %540 = vmatpush1.msra.mxu0 %v528
        %541 = vmatprep.subr.mxu0 0.0
        %542 = vmatpush1.msra.mxu0 %v530
        %543 = vmatprep.subr.mxu0 0.0
        %544 = vmatpush1.msra.mxu0 0.0
        %545 = vmatprep.subr.mxu0 0.0
        %546 = vmatpush1.msra.mxu0 0.0
        %547 = vmatprep.subr.mxu0 0.0
        %548 = vmatpush1.msra.mxu0 0.0
        %549 = vmatprep.subr.mxu0 0.0
        %550 = vmatpush1.msra.mxu0 0.0
        %551 = vmatprep.subr.mxu0 0.0
        %552 = vmatpush1.msra.mxu0 0.0
        %553 = vmatprep.subr.mxu0 0.0
        %554 = vmatpush1.msra.mxu0 0.0
        %555 = vmatprep.subr.mxu0 0.0
        %556 = vmatpush1.msra.mxu0 0.0
        %557 = vmatprep.subr.mxu0 0.0
        %558 = vmatpush1.msra.mxu0 0.0
        %559 = vmatprep.subr.mxu0 0.0
        %560 = vmatpush1.msra.mxu0 0.0
        %561 = vmatprep.subr.mxu0 0.0
        %562 = vmatpush1.msra.mxu0 0.0
        %563 = vmatprep.subr.mxu0 0.0
        %564 = vmatpush1.msra.mxu0 0.0
        %565 = vmatprep.subr.mxu0 0.0
        %566 = vmatpush1.msra.mxu0 0.0
        %567 = vmatprep.subr.mxu0 0.0
        %568 = vmatpush1.msra.mxu0 0.0
        %569 = vmatprep.subr.mxu0 0.0
        %570 = vmatpush1.msra.mxu0 0.0
        %571 = vmatprep.subr.mxu0 0.0
        %572 = vmatpush1.msra.mxu0 0.0
        %573 = vmatprep.subr.mxu0 0.0
        %574 = vmatpush1.msra.mxu0 0.0
        %575 = vmatprep.subr.mxu0 0.0
        %576 = vmatpush1.msra.mxu0 0.0
        %577 = vmatprep.subr.mxu0 0.0
        %578 = vmatpush1.msra.mxu0 0.0
        %579 = vmatprep.subr.mxu0 0.0
        %580 = vmatpush1.msra.mxu0 0.0
        %581 = vmatprep.subr.mxu0 0.0
        %582 = vmatpush1.msra.mxu0 0.0
        %583 = vmatprep.subr.mxu0 0.0
        %584 = vmatpush1.msra.mxu0 0.0
        %585 = vmatprep.subr.mxu0 0.0
        %586 = vmatpush1.msra.mxu0 0.0
        %587 = vmatprep.subr.mxu0 0.0
        %588 = vmatpush1.msra.mxu0 0.0
        %589 = vmatprep.subr.mxu0 0.0
        %590 = vmatpush1.msra.mxu0 0.0
        %591 = vmatprep.subr.mxu0 0.0
        %592 = vmatpush1.msra.mxu0 0.0
        %593 = vmatprep.subr.mxu0 0.0
        %594 = vmatpush1.msra.mxu0 0.0
        %595 = vmatprep.subr.mxu0 0.0
        %596 = vmatpush1.msra.mxu0 0.0
        %597 = vmatprep.subr.mxu0 0.0
        %598 = vmatpush1.msra.mxu0 0.0
        %599 = vmatprep.subr.mxu0 0.0
        %600 = vmatpush1.msra.mxu0 0.0
        %601 = vmatprep.subr.mxu0 0.0
        %602 = vmatpush1.msra.mxu0 0.0
        %603 = vmatprep.mubr.f32.mxu0 0.0
        %604 = vmatmul.mubr.f32.gmra.mrb[0].mxu0 %v534
        %v605 = vpop.f32.mrb[0].mxu0
        %v606 = vadd.f32 0.0, %v605
        %v607 = vpop.f32.mrb[0].mxu0
        %608 = vmatprep.mubr.f32.mxu0 0.0
        %609 = vmatmul.mubr.f32.gmra.mrb[0].mxu0 %v537
        %v610 = vpop.f32.mrb[0].mxu0
        %v611 = vadd.f32 0.0, %v610
        %v612 = vpop.f32.mrb[0].mxu0
        %613 = vdwg.mxu0
        %v614 = vadd.f32 %v523, %v606
        %v615 = vadd.f32 %v524, %v611
        %616 = vrot.lane.b32.xlu0 %v433, 64
        %v617 = vpop.permute.xlu0 %616
        %618 = vrot.lane.b32.xlu0 %v438, 64
        %v619 = vpop.permute.xlu0 %618
        %v623 = vsel %vm441, %v327, 0
        %v626 = vsel %vm441, %v328, 0
        %628 = vmatprep.subr.mxu0 0.0
        %629 = vmatpush1.msra.mxu0 %v617
        %630 = vmatprep.subr.mxu0 0.0
        %631 = vmatpush1.msra.mxu0 %v619
        %632 = vmatprep.subr.mxu0 0.0
        %633 = vmatpush1.msra.mxu0 0.0
        %634 = vmatprep.subr.mxu0 0.0
        %635 = vmatpush1.msra.mxu0 0.0
        %636 = vmatprep.subr.mxu0 0.0
        %637 = vmatpush1.msra.mxu0 0.0
        %638 = vmatprep.subr.mxu0 0.0
        %639 = vmatpush1.msra.mxu0 0.0
        %640 = vmatprep.subr.mxu0 0.0
        %641 = vmatpush1.msra.mxu0 0.0
        %642 = vmatprep.subr.mxu0 0.0
        %643 = vmatpush1.msra.mxu0 0.0
        %644 = vmatprep.subr.mxu0 0.0
        %645 = vmatpush1.msra.mxu0 0.0
        %646 = vmatprep.subr.mxu0 0.0
        %647 = vmatpush1.msra.mxu0 0.0
        %648 = vmatprep.subr.mxu0 0.0
        %649 = vmatpush1.msra.mxu0 0.0
        %650 = vmatprep.subr.mxu0 0.0
        %651 = vmatpush1.msra.mxu0 0.0
        %652 = vmatprep.subr.mxu0 0.0
        %653 = vmatpush1.msra.mxu0 0.0
        %654 = vmatprep.subr.mxu0 0.0
        %655 = vmatpush1.msra.mxu0 0.0
        %656 = vmatprep.subr.mxu0 0.0
        %657 = vmatpush1.msra.mxu0 0.0
        %658 = vmatprep.subr.mxu0 0.0
        %659 = vmatpush1.msra.mxu0 0.0
        %660 = vmatprep.subr.mxu0 0.0
        %661 = vmatpush1.msra.mxu0 0.0
        %662 = vmatprep.subr.mxu0 0.0
        %663 = vmatpush1.msra.mxu0 0.0
        %664 = vmatprep.subr.mxu0 0.0
        %665 = vmatpush1.msra.mxu0 0.0
        %666 = vmatprep.subr.mxu0 0.0
        %667 = vmatpush1.msra.mxu0 0.0
        %668 = vmatprep.subr.mxu0 0.0
        %669 = vmatpush1.msra.mxu0 0.0
        %670 = vmatprep.subr.mxu0 0.0
        %671 = vmatpush1.msra.mxu0 0.0
        %672 = vmatprep.subr.mxu0 0.0
        %673 = vmatpush1.msra.mxu0 0.0
        %674 = vmatprep.subr.mxu0 0.0
        %675 = vmatpush1.msra.mxu0 0.0
        %676 = vmatprep.subr.mxu0 0.0
        %677 = vmatpush1.msra.mxu0 0.0
        %678 = vmatprep.subr.mxu0 0.0
        %679 = vmatpush1.msra.mxu0 0.0
        %680 = vmatprep.subr.mxu0 0.0
        %681 = vmatpush1.msra.mxu0 0.0
        %682 = vmatprep.subr.mxu0 0.0
        %683 = vmatpush1.msra.mxu0 0.0
        %684 = vmatprep.subr.mxu0 0.0
        %685 = vmatpush1.msra.mxu0 0.0
        %686 = vmatprep.subr.mxu0 0.0
        %687 = vmatpush1.msra.mxu0 0.0
        %688 = vmatprep.subr.mxu0 0.0
        %689 = vmatpush1.msra.mxu0 0.0
        %690 = vmatprep.subr.mxu0 0.0
        %691 = vmatpush1.msra.mxu0 0.0
        %692 = vmatprep.mubr.f32.mxu0 0.0
        %693 = vmatmul.mubr.f32.gmra.mrb[0].mxu0 %v623
        %v694 = vpop.f32.mrb[0].mxu0
        %v695 = vadd.f32 0.0, %v694
        %v696 = vpop.f32.mrb[0].mxu0
        %697 = vmatprep.mubr.f32.mxu0 0.0
        %698 = vmatmul.mubr.f32.gmra.mrb[0].mxu0 %v626
        %v699 = vpop.f32.mrb[0].mxu0
        %v700 = vadd.f32 0.0, %v699
        %v701 = vpop.f32.mrb[0].mxu0
        %702 = vdwg.mxu0
        %v703 = vadd.f32 %v614, %v695
        %v704 = vadd.f32 %v615, %v700
        %705 = vrot.lane.b32.xlu0 %v433, 32
        %v706 = vpop.permute.xlu0 %705
        %707 = vrot.lane.b32.xlu0 %v438, 32
        %v708 = vpop.permute.xlu0 %707
        %v712 = vsel %vm441, %v330, 0
        %v715 = vsel %vm441, %v331, 0
        %717 = vmatprep.subr.mxu0 0.0
        %718 = vmatpush1.msra.mxu0 %v706
        %719 = vmatprep.subr.mxu0 0.0
        %720 = vmatpush1.msra.mxu0 %v708
        %721 = vmatprep.subr.mxu0 0.0
        %722 = vmatpush1.msra.mxu0 0.0
        %723 = vmatprep.subr.mxu0 0.0
        %724 = vmatpush1.msra.mxu0 0.0
        %725 = vmatprep.subr.mxu0 0.0
        %726 = vmatpush1.msra.mxu0 0.0
        %727 = vmatprep.subr.mxu0 0.0
        %728 = vmatpush1.msra.mxu0 0.0
        %729 = vmatprep.subr.mxu0 0.0
        %730 = vmatpush1.msra.mxu0 0.0
        %731 = vmatprep.subr.mxu0 0.0
        %732 = vmatpush1.msra.mxu0 0.0
        %733 = vmatprep.subr.mxu0 0.0
        %734 = vmatpush1.msra.mxu0 0.0
        %735 = vmatprep.subr.mxu0 0.0
        %736 = vmatpush1.msra.mxu0 0.0
        %737 = vmatprep.subr.mxu0 0.0
        %738 = vmatpush1.msra.mxu0 0.0
        %739 = vmatprep.subr.mxu0 0.0
        %740 = vmatpush1.msra.mxu0 0.0
        %741 = vmatprep.subr.mxu0 0.0
        %742 = vmatpush1.msra.mxu0 0.0
        %743 = vmatprep.subr.mxu0 0.0
        %744 = vmatpush1.msra.mxu0 0.0
        %745 = vmatprep.subr.mxu0 0.0
        %746 = vmatpush1.msra.mxu0 0.0
        %747 = vmatprep.subr.mxu0 0.0
        %748 = vmatpush1.msra.mxu0 0.0
        %749 = vmatprep.subr.mxu0 0.0
        %750 = vmatpush1.msra.mxu0 0.0
        %751 = vmatprep.subr.mxu0 0.0
        %752 = vmatpush1.msra.mxu0 0.0
        %753 = vmatprep.subr.mxu0 0.0
        %754 = vmatpush1.msra.mxu0 0.0
        %755 = vmatprep.subr.mxu0 0.0
        %756 = vmatpush1.msra.mxu0 0.0
        %757 = vmatprep.subr.mxu0 0.0
        %758 = vmatpush1.msra.mxu0 0.0
        %759 = vmatprep.subr.mxu0 0.0
        %760 = vmatpush1.msra.mxu0 0.0
        %761 = vmatprep.subr.mxu0 0.0
        %762 = vmatpush1.msra.mxu0 0.0
        %763 = vmatprep.subr.mxu0 0.0
        %764 = vmatpush1.msra.mxu0 0.0
        %765 = vmatprep.subr.mxu0 0.0
        %766 = vmatpush1.msra.mxu0 0.0
        %767 = vmatprep.subr.mxu0 0.0
        %768 = vmatpush1.msra.mxu0 0.0
        %769 = vmatprep.subr.mxu0 0.0
        %770 = vmatpush1.msra.mxu0 0.0
        %771 = vmatprep.subr.mxu0 0.0
        %772 = vmatpush1.msra.mxu0 0.0
        %773 = vmatprep.subr.mxu0 0.0
        %774 = vmatpush1.msra.mxu0 0.0
        %775 = vmatprep.subr.mxu0 0.0
        %776 = vmatpush1.msra.mxu0 0.0
        %777 = vmatprep.subr.mxu0 0.0
        %778 = vmatpush1.msra.mxu0 0.0
        %779 = vmatprep.subr.mxu0 0.0
        %780 = vmatpush1.msra.mxu0 0.0
        %781 = vmatprep.mubr.f32.mxu0 0.0
        %782 = vmatmul.mubr.f32.gmra.mrb[0].mxu0 %v712
        %v783 = vpop.f32.mrb[0].mxu0
        %v784 = vadd.f32 0.0, %v783
        %v785 = vpop.f32.mrb[0].mxu0
        %786 = vmatprep.mubr.f32.mxu0 0.0
        %787 = vmatmul.mubr.f32.gmra.mrb[0].mxu0 %v715
        %v788 = vpop.f32.mrb[0].mxu0
        %v789 = vadd.f32 0.0, %v788
        %v790 = vpop.f32.mrb[0].mxu0
        %791 = vdwg.mxu0
        %v792 = vadd.f32 %v703, %v784
        %v793 = vadd.f32 %v704, %v789
        %v794 = vtanh.pop %v792
        %v795 = vtanh.pop %v793
        %vm796 = vcmask 261120
        %v798 = vsel %vm796, %v794, 0
        %v801 = vsel %vm796, %v795, 0
        %803 = vmatprep.subr.mxu0 0.0
        %804 = vmatpush1.msra.mxu0 %v317
        %805 = vmatprep.subr.mxu0 0.0
        %806 = vmatpush1.msra.mxu0 %v318
        %807 = vmatprep.subr.mxu0 0.0
        %808 = vmatpush1.msra.mxu0 %v319
        %809 = vmatprep.subr.mxu0 0.0
        %810 = vmatpush1.msra.mxu0 %v320
        %811 = vmatprep.subr.mxu0 0.0
        %812 = vmatpush1.msra.mxu0 0.0
        %813 = vmatprep.subr.mxu0 0.0
        %814 = vmatpush1.msra.mxu0 0.0
        %815 = vmatprep.subr.mxu0 0.0
        %816 = vmatpush1.msra.mxu0 0.0
        %817 = vmatprep.subr.mxu0 0.0
        %818 = vmatpush1.msra.mxu0 0.0
        %819 = vmatprep.subr.mxu0 0.0
        %820 = vmatpush1.msra.mxu0 0.0
        %821 = vmatprep.subr.mxu0 0.0
        %822 = vmatpush1.msra.mxu0 0.0
        %823 = vmatprep.subr.mxu0 0.0
        %824 = vmatpush1.msra.mxu0 0.0
        %825 = vmatprep.subr.mxu0 0.0
        %826 = vmatpush1.msra.mxu0 0.0
        %827 = vmatprep.subr.mxu0 0.0
        %828 = vmatpush1.msra.mxu0 0.0
        %829 = vmatprep.subr.mxu0 0.0
        %830 = vmatpush1.msra.mxu0 0.0
        %831 = vmatprep.subr.mxu0 0.0
        %832 = vmatpush1.msra.mxu0 0.0
        %833 = vmatprep.subr.mxu0 0.0
        %834 = vmatpush1.msra.mxu0 0.0
        %835 = vmatprep.subr.mxu0 0.0
        %836 = vmatpush1.msra.mxu0 0.0
        %837 = vmatprep.subr.mxu0 0.0
        %838 = vmatpush1.msra.mxu0 0.0
        %839 = vmatprep.subr.mxu0 0.0
        %840 = vmatpush1.msra.mxu0 0.0
        %841 = vmatprep.subr.mxu0 0.0
        %842 = vmatpush1.msra.mxu0 0.0
        %843 = vmatprep.subr.mxu0 0.0
        %844 = vmatpush1.msra.mxu0 0.0
        %845 = vmatprep.subr.mxu0 0.0
        %846 = vmatpush1.msra.mxu0 0.0
        %847 = vmatprep.subr.mxu0 0.0
        %848 = vmatpush1.msra.mxu0 0.0
        %849 = vmatprep.subr.mxu0 0.0
        %850 = vmatpush1.msra.mxu0 0.0
        %851 = vmatprep.subr.mxu0 0.0
        %852 = vmatpush1.msra.mxu0 0.0
        %853 = vmatprep.subr.mxu0 0.0
        %854 = vmatpush1.msra.mxu0 0.0
        %855 = vmatprep.subr.mxu0 0.0
        %856 = vmatpush1.msra.mxu0 0.0
        %857 = vmatprep.subr.mxu0 0.0
        %858 = vmatpush1.msra.mxu0 0.0
        %859 = vmatprep.subr.mxu0 0.0
        %860 = vmatpush1.msra.mxu0 0.0
        %861 = vmatprep.subr.mxu0 0.0
        %862 = vmatpush1.msra.mxu0 0.0
        %863 = vmatprep.subr.mxu0 0.0
        %864 = vmatpush1.msra.mxu0 0.0
        %865 = vmatprep.subr.mxu0 0.0
        %866 = vmatpush1.msra.mxu0 0.0
        %867 = vmatprep.mubr.f32.mxu0 0.0
        %868 = vmatmul.mubr.f32.gmra.mrb[0].mxu0 %v798
        %v869 = vpop.f32.mrb[0].mxu0
        %v870 = vadd.f32 %v344, %v869
        %v871 = vpop.f32.mrb[0].mxu0
        %872 = vmatprep.mubr.f32.mxu0 0.0
        %873 = vmatmul.mubr.f32.gmra.mrb[0].mxu0 %v801
        %v874 = vpop.f32.mrb[0].mxu0
        %v875 = vadd.f32 %v344, %v874
        %v876 = vpop.f32.mrb[0].mxu0
        %877 = vdwg.mxu0
        %v878 = vstv %s354
        %v879 = vsub.f32 %v314, %v878
        %v880 = vsub.f32 %v315, %v878
        %v881 = vmax.f32 %v879, 0.0
        %v882 = vmax.f32 %v880, 0.0
        %v883 = vmin.f32 %v881, 1.0
        %v884 = vmin.f32 %v882, 1.0
        %886 = vset.pattern.permute.xlu0 0
        %887 = vperm.xlu0 %886, %v883
        %v888 = vpop.permute.xlu0 %887
        %891 = vset.pattern.permute.xlu0 0
        %892 = vperm.xlu0 %891, %v884
        %v893 = vpop.permute.xlu0 %892
        %v895 = vmul.f32 %v888, %v870
        %v896 = vmul.f32 %v893, %v875
        %v897 = vadd.f32 %v352, %v895
        %v898 = vadd.f32 %v353, %v896
      $region53: #{tpu_custom_call.1} parent=47 // loop_footer
        %s349 = sadd.s32 %s347, 1
      $region54: #{tpu_custom_call.1} parent=47 // loop_footer_branch
        %346 = sbr.rel target = $region50
      $region55: #{tpu_custom_call.1} parent=47 // loop_exit
        _
      %vm899 = vcmask 48128
      %900 = vst.msk [vmem:[%s309] sm:$0xff] %vm899, %v352
      %901 = vst.msk [vmem:[%s309 + $0x8] sm:$0xff] %vm899, %v353
      %s902 = smul.u32 2, %s25
      %p903 = scmp.lt.s32.totalorder %s902, 3
      %s904 = scalar_select %p903, %s902, 3
      %s905 = smul.addr %s904, 8
      %s906 = scalar_lea.vmem %s8, %s905
      // Predicated region
      $region56: #{tpu_custom_call.1} parent=47 // pred_check
        %p907 = pneg %p200
      $region57: #{tpu_custom_call.1} parent=47 // pred_check_branch
        %909 = sbr.rel (%p907) target = $region59
      $region58: #{tpu_custom_call.1} parent=47 // pred_region
        %s910 = smul.u32 2, %s25
      $region59: #{tpu_custom_call.1} parent=47 // pred_fallthru
        _
    $region48: #{tpu_custom_call.1} parent=5 // pred_fallthru
      _
    %p911 = scmp.le.s32.totalorder 2, %s20
    // Predicated region
    $region60: #{tpu_custom_call.1} parent=5 // pred_check
      %p912 = pneg %p911
    $region61: #{tpu_custom_call.1} parent=5 // pred_check_branch
      %914 = sbr.rel (%p912) target = $region63
    $region62: #{tpu_custom_call.1} parent=5 // pred_region
      %s915 = ssub.s32 %s20, 2
      // Predicated region
      $region64: #{tpu_custom_call.1} parent=62 // pred_check
        %p916 = pneg %p206
      $region65: #{tpu_custom_call.1} parent=62 // pred_check_branch
        %918 = sbr.rel (%p916) target = $region67
      $region66: #{tpu_custom_call.1} parent=62 // pred_region
        %s919 = smul.u32 2, %s26
        %p920 = scmp.lt.s32.totalorder %s919, 3
        %s921 = scalar_select %p920, %s919, 3
        %s922 = smul.addr %s921, 8
        %s923 = scalar_lea.vmem %s8, %s922
      $region67: #{tpu_custom_call.1} parent=62 // pred_fallthru
        _
    $region63: #{tpu_custom_call.1} parent=5 // pred_fallthru
      _
  $region6: #{tpu_custom_call.1} parent=0 // loop_footer
    %s24 = sadd.s32 1, %s20
  $region7: #{tpu_custom_call.1} parent=0 // loop_footer_branch
    %19 = sbr.rel target = $region3
  $region8: #{tpu_custom_call.1} parent=0 // loop_exit
    _

</llo_original>
